<compile_context>
chip_gen: v6e
topology: v6e:2x2x1
jax: 0.10.0
libtpu: 0.0.40
codegen_flags: <defaults>
</compile_context>

<pallas_src>
import functools

import jax
import jax.numpy as jnp
from jax import lax
from jax.experimental import pallas as pl
from jax.experimental.pallas import tpu as pltpu

C_PAD = 128  # lane-dense padded class dimension


def _round_up(x, m):
    return (x + m - 1) // m * m


def _pick_tile(n_pad, max_tile):
    for cand in (2048, 1024, 512, 256, 128):
        if cand <= max_tile and cand <= n_pad and n_pad % cand == 0:
            return cand
    return 128


def _vmem_budget_bytes():
    """Generation-aware scoped-VMEM budget (leave ~20% headroom for the compiler)."""
    try:
        cap = int(pltpu.get_tpu_info().vmem_capacity_bytes)
    except Exception:
        cap = 64 << 20  # conservative fallback (v7x per-core VMEM)
    return max(32 << 20, min(int(0.80 * cap), 112 << 20))


# -----------------------------------------------------------------------------
# Kernel A: fully fused path for small graphs (one launch, one grid point).
# -----------------------------------------------------------------------------
def _fused_kernel(x_ref, w1_ref, b1_ref, w2_ref, b2_ref, adj_ref, out_ref, *, K, alpha):
    h = jnp.dot(x_ref[...], w1_ref[...], preferred_element_type=jnp.float32)
    h = jnp.maximum(h + b1_ref[...], 0.0).astype(jnp.bfloat16)
    z = jnp.dot(h, w2_ref[...], preferred_element_type=jnp.float32) + b2_ref[...]
    az = alpha * z
    adj = adj_ref[...]  # bf16, already pre-scaled by (1 - alpha)

    def body(_, p):
        return jnp.dot(adj, p.astype(jnp.bfloat16),
                       preferred_element_type=jnp.float32) + az

    out_ref[...] = lax.fori_loop(0, K, body, z, unroll=(K <= 32))


# -----------------------------------------------------------------------------
# Kernel B1: MLP head  z = relu(x @ W1 + b1) @ W2 + b2   (dropout = identity)
# -----------------------------------------------------------------------------
def _mlp_kernel(x_ref, w1_ref, b1_ref, w2_ref, b2_ref, z_ref):
    h = jnp.dot(x_ref[...], w1_ref[...], preferred_element_type=jnp.float32)
    h = jnp.maximum(h + b1_ref[...], 0.0).astype(jnp.bfloat16)
    z_ref[...] = jnp.dot(h, w2_ref[...], preferred_element_type=jnp.float32) + b2_ref[...]


# -----------------------------------------------------------------------------
# Kernel B2: APPNP propagation, grid = (K, row_tiles, contraction_tiles).
#   p_0 = z ;  p_{i+1} = A' @ p_i + alpha*z     with A' = (1 - alpha) * A_hat
# p lives in double-banked bf16 VMEM scratch.  The adjacency is either
# VMEM-resident (manual one-time DMA; host pre-blocked so (r,k) tiles are
# sublane-only slices) or streamed via BlockSpec.
# -----------------------------------------------------------------------------
def _prop_kernel(z_ref, adj_ref, out_ref, acc_ref, p_ref, *resident_scratch,
                 tile_r, tile_k, n_pad, alpha, K, adj_resident):
    i = pl.program_id(0)   # APPNP iteration (sequential carry through p banks)
    r = pl.program_id(1)   # output row tile
    k = pl.program_id(2)   # contraction tile (reduction axis, last)
    nk = pl.num_programs(2)

    if adj_resident:
        adj_vmem, dma_sem = resident_scratch

        # One-time full-adjacency DMA HBM -> VMEM; stays resident for all K iters.
        @pl.when((i == 0) & (r == 0) & (k == 0))
        def _():
            cp = pltpu.make_async_copy(adj_ref, adj_vmem, dma_sem.at[0])
            cp.start()
            cp.wait()

    # p_0 = z, written into bank 0 while sweeping k during (i==0, r==0).
    @pl.when((i == 0) & (r == 0))
    def _():
        off = pl.multiple_of(k * tile_k, tile_k)
        p_ref[pl.ds(off, tile_k), :] = z_ref[pl.ds(off, tile_k), :].astype(jnp.bfloat16)

    @pl.when(k == 0)
    def _():
        acc_ref[...] = jnp.zeros_like(acc_ref)

    if adj_resident:
        # Blocked layout: tile (r, k) lives at rows [k*n_pad + r*tile_r, +tile_r).
        a_off = pl.multiple_of(k * n_pad + r * tile_r, tile_r)
        a_blk = adj_vmem[pl.ds(a_off, tile_r), :]
    else:
        a_blk = adj_ref[...]

    cur = lax.rem(i, 2) * n_pad
    p_off = pl.multiple_of(cur + k * tile_k, tile_k)
    p_blk = p_ref[pl.ds(p_off, tile_k), :]
    acc_ref[...] += jnp.dot(a_blk, p_blk, preferred_element_type=jnp.float32)

    @pl.when(k == nk - 1)
    def _():
        r_off = pl.multiple_of(r * tile_r, tile_r)
        new_p = acc_ref[...] + alpha * z_ref[pl.ds(r_off, tile_r), :]
        nxt = pl.multiple_of((n_pad - cur) + r * tile_r, tile_r)
        p_ref[pl.ds(nxt, tile_r), :] = new_p.astype(jnp.bfloat16)

    # HBM writeback only on the final APPNP iteration (out index_map is pinned
    # to block 0 for i < K-1, so no intermediate writebacks occur).
    @pl.when((k == nk - 1) & (i == K - 1))
    def _():
        r_off = pl.multiple_of(r * tile_r, tile_r)
        out_ref[...] = acc_ref[...] + alpha * z_ref[pl.ds(r_off, tile_r), :]


def appnp_net_forward(x, w1_t, b1, w2_t, b2, adj_norm, *, K, alpha,
                      block_r=512, block_k=2048, fused=None, adj_resident=None):
    """APPNP_net forward (eval mode).

    x: [N, F] f32; w1_t: [F, H]; b1: [1, H] or [H]; w2_t: [H, C]; b2: [1, C] or [C];
    adj_norm: [N, N] dense D^-1/2 (A + I) D^-1/2.  Returns logits [N, C] f32.
    """
    assert K >= 1
    N, F = x.shape
    H = w1_t.shape[1]
    C = w2_t.shape[1]
    assert C <= C_PAD

    n_pad = _round_up(N, 128)
    F_PAD = _round_up(F, 128)
    H_PAD = _round_up(H, 128)

    tile_r = _pick_tile(n_pad, block_r)
    tile_k = _pick_tile(n_pad, block_k)
    R = n_pad // tile_r
    KT = n_pad // tile_k

    budget = _vmem_budget_bytes()

    # ---- host-side padding / casting / pre-scaling (layout plumbing) -------
    x_p = (jnp.zeros((n_pad, F_PAD), jnp.float32).at[:N, :F].set(x)
           .astype(jnp.bfloat16))
    w1_p = (jnp.zeros((F_PAD, H_PAD), jnp.float32).at[:F, :H].set(w1_t)
            .astype(jnp.bfloat16))
    b1_p = jnp.zeros((1, H_PAD), jnp.float32).at[:, :H].set(jnp.reshape(b1, (1, H)))
    w2_p = (jnp.zeros((H_PAD, C_PAD), jnp.float32).at[:H, :C].set(w2_t)
            .astype(jnp.bfloat16))
    b2_p = jnp.zeros((1, C_PAD), jnp.float32).at[:, :C].set(jnp.reshape(b2, (1, C)))
    # (1 - alpha) folded into the adjacency once on the host.
    adj_p = (jnp.zeros((n_pad, n_pad), jnp.float32)
             .at[:N, :N].set((1.0 - alpha) * adj_norm)
             .astype(jnp.bfloat16))

    # ---- fully fused single-launch path for small graphs --------------------
    fused_bytes = 2 * (n_pad * F_PAD * 2 + F_PAD * H_PAD * 2 + H_PAD * C_PAD * 2
                       + n_pad * n_pad * 2 + n_pad * H_PAD * 4
                       + 4 * n_pad * C_PAD * 4)
    if fused is None:
        fused = (n_pad <= 2048) and (fused_bytes <= budget // 2)

    if fused:
        out = pl.pallas_call(
            functools.partial(_fused_kernel, K=K, alpha=float(alpha)),
            grid=(1,),
            in_specs=[
                pl.BlockSpec((n_pad, F_PAD), lambda i: (0, 0)),
                pl.BlockSpec((F_PAD, H_PAD), lambda i: (0, 0)),
                pl.BlockSpec((1, H_PAD), lambda i: (0, 0)),
                pl.BlockSpec((H_PAD, C_PAD), lambda i: (0, 0)),
                pl.BlockSpec((1, C_PAD), lambda i: (0, 0)),
                pl.BlockSpec((n_pad, n_pad), lambda i: (0, 0)),
            ],
            out_specs=pl.BlockSpec((n_pad, C_PAD), lambda i: (0, 0)),
            out_shape=jax.ShapeDtypeStruct((n_pad, C_PAD), jnp.float32),
            compiler_params=pltpu.CompilerParams(
                dimension_semantics=("arbitrary",),
                vmem_limit_bytes=budget),
        )(x_p, w1_p, b1_p, w2_p, b2_p, adj_p)
        return out[:N, :C]

    # ---- MLP head (row-tiled, parallel) --------------------------------------
    z = pl.pallas_call(
        _mlp_kernel,
        grid=(R,),
        in_specs=[
            pl.BlockSpec((tile_r, F_PAD), lambda r: (r, 0)),
            pl.BlockSpec((F_PAD, H_PAD), lambda r: (0, 0)),
            pl.BlockSpec((1, H_PAD), lambda r: (0, 0)),
            pl.BlockSpec((H_PAD, C_PAD), lambda r: (0, 0)),
            pl.BlockSpec((1, C_PAD), lambda r: (0, 0)),
        ],
        out_specs=pl.BlockSpec((tile_r, C_PAD), lambda r: (r, 0)),
        out_shape=jax.ShapeDtypeStruct((n_pad, C_PAD), jnp.float32),
        compiler_params=pltpu.CompilerParams(
            dimension_semantics=("parallel",)),
    )(x_p, w1_p, b1_p, w2_p, b2_p)

    # ---- APPNP propagation ---------------------------------------------------
    # Common VMEM: resident z (assume 2 buffers), bf16 p banks, acc, out blocks,
    # plus slack for matmul operand staging.
    common = (2 * n_pad * C_PAD * 4 + 2 * n_pad * C_PAD * 2
              + tile_r * C_PAD * 4 + 2 * tile_r * C_PAD * 4
              + 2 * tile_r * tile_k * 2 + tile_k * C_PAD * 2)
    resident_bytes = common + n_pad * n_pad * 2
    stream_bytes = common + 2 * tile_r * tile_k * 2
    if adj_resident is None:
        adj_resident = resident_bytes <= budget

    out_map = lambda i, r, k: (jnp.where(i == K - 1, r, 0), 0)

    if adj_resident:
        # Re-block the adjacency so a (r, k) tile is a contiguous sublane slice
        # of the resident VMEM copy:  blocked[k*n_pad + row, :] = adj[row, k-tile].
        adj_in = (adj_p.reshape(n_pad, KT, tile_k)
                  .transpose(1, 0, 2)
                  .reshape(KT * n_pad, tile_k))
        adj_spec = pl.BlockSpec(memory_space=pl.ANY)
        extra_scratch = [pltpu.VMEM((KT * n_pad, tile_k), jnp.bfloat16),
                         pltpu.SemaphoreType.DMA((1,))]
        needed = resident_bytes
    else:
        adj_in = adj_p
        adj_spec = pl.BlockSpec((tile_r, tile_k), lambda i, r, k: (r, k))
        extra_scratch = []
        needed = stream_bytes

    vmem_limit = int(min(budget, max(needed + (8 << 20), 32 << 20)))

    out = pl.pallas_call(
        functools.partial(_prop_kernel, tile_r=tile_r, tile_k=tile_k, n_pad=n_pad,
                          alpha=float(alpha), K=K, adj_resident=bool(adj_resident)),
        grid=(K, R, KT),
        in_specs=[
            pl.BlockSpec((n_pad, C_PAD), lambda i, r, k: (0, 0)),   # z, VMEM-resident
            adj_spec,
        ],
        out_specs=pl.BlockSpec((tile_r, C_PAD), out_map),
        out_shape=jax.ShapeDtypeStruct((n_pad, C_PAD), jnp.float32),
        scratch_shapes=[pltpu.VMEM((tile_r, C_PAD), jnp.float32),        # accumulator
                        pltpu.VMEM((2 * n_pad, C_PAD), jnp.bfloat16)]    # p state, 2 banks
                       + extra_scratch,
        compiler_params=pltpu.CompilerParams(
            # TODO(synk): v7x megacore — carrying p through an HBM ping-pong (or a
            # core_map row split) would allow a "parallel" row axis; the shared
            # VMEM p banks force all axes to stay "arbitrary" here.
            dimension_semantics=("arbitrary", "arbitrary", "arbitrary"),
            vmem_limit_bytes=vmem_limit),
    )(z, adj_in)

    return out[:N, :C]


def build_normalized_adjacency(edge_index, num_nodes):
    """GCN-style normalization with self-loops:  D^-1/2 (A + I) D^-1/2."""
    src, dst = edge_index
    adj = jnp.zeros((num_nodes, num_nodes), jnp.float32).at[dst, src].set(1.0)
    adj = jnp.maximum(adj, jnp.eye(num_nodes, dtype=jnp.float32))
    deg = adj.sum(axis=1)
    d_inv_sqrt = lax.rsqrt(jnp.maximum(deg, 1e-12))
    return adj * d_inv_sqrt[:, None] * d_inv_sqrt[None, :]


def _reference_forward(x, w1_t, b1, w2_t, b2, adj_norm, K, alpha):
    h = jnp.maximum(x @ w1_t + jnp.reshape(b1, (1, -1)), 0.0)
    z = h @ w2_t + jnp.reshape(b2, (1, -1))
    p = z
    for _ in range(K):
        p = (1.0 - alpha) * (adj_norm @ p) + alpha * z
    return p


if __name__ == "__main__":
    root = jax.random.PRNGKey(0)

    def lin_init(kw, kb, fan_in, fan_out):
        bound = (1.0 / fan_in) ** 0.5
        w = jax.random.uniform(kw, (fan_out, fan_in), jnp.float32, -bound, bound)
        b = jax.random.uniform(kb, (1, fan_out), jnp.float32, -bound, bound)
        return w, b

    def make_graph(key, n, extra_edges):
        idx = jnp.arange(n)
        src = jnp.concatenate([idx, (idx + 1) % n])
        dst = jnp.concatenate([(idx + 1) % n, idx])
        if extra_edges > 0:
            ks, kd = jax.random.split(key)
            es = jax.random.randint(ks, (extra_edges,), 0, n)
            ed = jax.random.randint(kd, (extra_edges,), 0, n)
            src = jnp.concatenate([src, es, ed])
            dst = jnp.concatenate([dst, ed, es])
        return jnp.stack([src, dst], axis=0)

    def run_case(name, key, *, N, F, H, C, K, alpha, extra_edges, **fwd_kwargs):
        kx, k1, kb1, k2, kb2, kg = jax.random.split(key, 6)
        x = jax.random.normal(kx, (N, F), jnp.float32)
        edge_index = make_graph(kg, N, extra_edges)
        adj_norm = build_normalized_adjacency(edge_index, N)
        w1, b1 = lin_init(k1, kb1, F, H)   # lin1 weight: [H, F]
        w2, b2 = lin_init(k2, kb2, H, C)   # lin2 weight: [C, H]

        out = appnp_net_forward(x, w1.T, b1, w2.T, b2, adj_norm,
                                K=K, alpha=alpha, **fwd_kwargs)
        jax.block_until_ready(out)
        assert out.shape == (N, C)

        ref = _reference_forward(x, w1.T, b1, w2.T, b2, adj_norm, K, alpha)
        err = float(jnp.max(jnp.abs(out - ref)))
        assert err < 8e-2, f"{name}: max abs error vs f32 reference too large: {err}"

    # 1) Small graph (module-scale config) -> fully fused single-launch kernel.
    run_case("fused", jax.random.fold_in(root, 1),
             N=64, F=16, H=32, C=8, K=10, alpha=0.1, extra_edges=0)

    # 2) Tiled path with the adjacency VMEM-resident across all K iterations.
    run_case("tiled_resident", jax.random.fold_in(root, 2),
             N=512, F=48, H=96, C=7, K=6, alpha=0.15, extra_edges=1024,
             fused=False, adj_resident=True, block_r=128, block_k=128)

    # 3) Tiled path with the adjacency streamed from HBM (large-graph fallback).
    run_case("tiled_streamed", jax.random.fold_in(root, 3),
             N=512, F=48, H=96, C=7, K=6, alpha=0.15, extra_edges=1024,
             fused=False, adj_resident=False, block_r=128, block_k=256)

    print("KERNEL_OK")
</pallas_src>

<mosaic_0001>
module attributes {stable_mosaic.version = 11 : i64} {
  func.func @_fused_kernel(%arg0: i32, %arg1: memref<128x128xbf16, #tpu.memory_space<vmem>>, %arg2: memref<128x128xbf16, #tpu.memory_space<vmem>>, %arg3: memref<1x128xf32, #tpu.memory_space<vmem>>, %arg4: memref<128x128xbf16, #tpu.memory_space<vmem>>, %arg5: memref<1x128xf32, #tpu.memory_space<vmem>>, %arg6: memref<128x128xbf16, #tpu.memory_space<vmem>>, %arg7: memref<128x128xf32, #tpu.memory_space<vmem>>) attributes {dimension_semantics = [#tpu.dimension_semantics<arbitrary>], iteration_bounds = array<i64: 1>, scalar_prefetch = 0 : i64, scratch_operands = 0 : i64, tpu.core_type = #tpu.core_type<tc>, window_params = [{pipeline_mode = #tpu.pipeline_mode<synchronous>, transform_indices = @transform_0, window_bounds = array<i64: 128, 128>}, {pipeline_mode = #tpu.pipeline_mode<synchronous>, transform_indices = @transform_1, window_bounds = array<i64: 128, 128>}, {pipeline_mode = #tpu.pipeline_mode<synchronous>, transform_indices = @transform_2, window_bounds = array<i64: 1, 128>}, {pipeline_mode = #tpu.pipeline_mode<synchronous>, transform_indices = @transform_3, window_bounds = array<i64: 128, 128>}, {pipeline_mode = #tpu.pipeline_mode<synchronous>, transform_indices = @transform_4, window_bounds = array<i64: 1, 128>}, {pipeline_mode = #tpu.pipeline_mode<synchronous>, transform_indices = @transform_5, window_bounds = array<i64: 128, 128>}, {pipeline_mode = #tpu.pipeline_mode<synchronous>, transform_indices = @transform_6, window_bounds = array<i64: 128, 128>}]} {
    %c0 = arith.constant 0 : index
    %c0_0 = arith.constant 0 : index
    %0 = vector.load %arg1[%c0, %c0_0] : memref<128x128xbf16, #tpu.memory_space<vmem>>, vector<128x128xbf16>
    %c0_1 = arith.constant 0 : index
    %c0_2 = arith.constant 0 : index
    %1 = vector.load %arg2[%c0_1, %c0_2] : memref<128x128xbf16, #tpu.memory_space<vmem>>, vector<128x128xbf16>
    %cst = arith.constant dense<0.000000e+00> : vector<128x128xf32>
    %2 = tpu.matmul %0, %1, %cst {dimension_numbers = #tpu.dot_dimension_numbers<[1], [0], [0], [1], [0, 0, 1, 1], [], []>} : vector<128x128xbf16>, vector<128x128xbf16>, vector<128x128xf32> -> vector<128x128xf32>
    %c0_3 = arith.constant 0 : index
    %c0_4 = arith.constant 0 : index
    %3 = vector.load %arg3[%c0_3, %c0_4] : memref<1x128xf32, #tpu.memory_space<vmem>>, vector<1x128xf32>
    %4 = vector.broadcast %3 : vector<1x128xf32> to vector<128x128xf32>
    %5 = arith.addf %2, %4 : vector<128x128xf32>
    %cst_5 = arith.constant 0.000000e+00 : f32
    %6 = vector.broadcast %cst_5 : f32 to vector<128x128xf32>
    %7 = arith.maximumf %5, %6 : vector<128x128xf32>
    %8 = arith.truncf %7 : vector<128x128xf32> to vector<128x128xbf16>
    %c0_6 = arith.constant 0 : index
    %c0_7 = arith.constant 0 : index
    %9 = vector.load %arg4[%c0_6, %c0_7] : memref<128x128xbf16, #tpu.memory_space<vmem>>, vector<128x128xbf16>
    %cst_8 = arith.constant dense<0.000000e+00> : vector<128x128xf32>
    %10 = tpu.matmul %8, %9, %cst_8 {dimension_numbers = #tpu.dot_dimension_numbers<[1], [0], [0], [1], [0, 0, 1, 1], [], []>} : vector<128x128xbf16>, vector<128x128xbf16>, vector<128x128xf32> -> vector<128x128xf32>
    %c0_9 = arith.constant 0 : index
    %c0_10 = arith.constant 0 : index
    %11 = vector.load %arg5[%c0_9, %c0_10] : memref<1x128xf32, #tpu.memory_space<vmem>>, vector<1x128xf32>
    %12 = vector.broadcast %11 : vector<1x128xf32> to vector<128x128xf32>
    %13 = arith.addf %10, %12 : vector<128x128xf32>
    %cst_11 = arith.constant 1.000000e-01 : f32
    %14 = vector.broadcast %cst_11 : f32 to vector<128x128xf32>
    %15 = arith.mulf %14, %13 : vector<128x128xf32>
    %c0_12 = arith.constant 0 : index
    %c0_13 = arith.constant 0 : index
    %16 = vector.load %arg6[%c0_12, %c0_13] : memref<128x128xbf16, #tpu.memory_space<vmem>>, vector<128x128xbf16>
    %c0_i32 = arith.constant 0 : i32
    %17 = arith.truncf %13 : vector<128x128xf32> to vector<128x128xbf16>
    %cst_14 = arith.constant dense<0.000000e+00> : vector<128x128xf32>
    %18 = tpu.matmul %16, %17, %cst_14 {dimension_numbers = #tpu.dot_dimension_numbers<[1], [0], [0], [1], [0, 0, 1, 1], [], []>} : vector<128x128xbf16>, vector<128x128xbf16>, vector<128x128xf32> -> vector<128x128xf32>
    %19 = arith.addf %18, %15 : vector<128x128xf32>
    %c1_i32 = arith.constant 1 : i32
    %20 = arith.truncf %19 : vector<128x128xf32> to vector<128x128xbf16>
    %cst_15 = arith.constant dense<0.000000e+00> : vector<128x128xf32>
    %21 = tpu.matmul %16, %20, %cst_15 {dimension_numbers = #tpu.dot_dimension_numbers<[1], [0], [0], [1], [0, 0, 1, 1], [], []>} : vector<128x128xbf16>, vector<128x128xbf16>, vector<128x128xf32> -> vector<128x128xf32>
    %22 = arith.addf %21, %15 : vector<128x128xf32>
    %c2_i32 = arith.constant 2 : i32
    %23 = arith.truncf %22 : vector<128x128xf32> to vector<128x128xbf16>
    %cst_16 = arith.constant dense<0.000000e+00> : vector<128x128xf32>
    %24 = tpu.matmul %16, %23, %cst_16 {dimension_numbers = #tpu.dot_dimension_numbers<[1], [0], [0], [1], [0, 0, 1, 1], [], []>} : vector<128x128xbf16>, vector<128x128xbf16>, vector<128x128xf32> -> vector<128x128xf32>
    %25 = arith.addf %24, %15 : vector<128x128xf32>
    %c3_i32 = arith.constant 3 : i32
    %26 = arith.truncf %25 : vector<128x128xf32> to vector<128x128xbf16>
    %cst_17 = arith.constant dense<0.000000e+00> : vector<128x128xf32>
    %27 = tpu.matmul %16, %26, %cst_17 {dimension_numbers = #tpu.dot_dimension_numbers<[1], [0], [0], [1], [0, 0, 1, 1], [], []>} : vector<128x128xbf16>, vector<128x128xbf16>, vector<128x128xf32> -> vector<128x128xf32>
    %28 = arith.addf %27, %15 : vector<128x128xf32>
    %c4_i32 = arith.constant 4 : i32
    %29 = arith.truncf %28 : vector<128x128xf32> to vector<128x128xbf16>
    %cst_18 = arith.constant dense<0.000000e+00> : vector<128x128xf32>
    %30 = tpu.matmul %16, %29, %cst_18 {dimension_numbers = #tpu.dot_dimension_numbers<[1], [0], [0], [1], [0, 0, 1, 1], [], []>} : vector<128x128xbf16>, vector<128x128xbf16>, vector<128x128xf32> -> vector<128x128xf32>
    %31 = arith.addf %30, %15 : vector<128x128xf32>
    %c5_i32 = arith.constant 5 : i32
    %32 = arith.truncf %31 : vector<128x128xf32> to vector<128x128xbf16>
    %cst_19 = arith.constant dense<0.000000e+00> : vector<128x128xf32>
    %33 = tpu.matmul %16, %32, %cst_19 {dimension_numbers = #tpu.dot_dimension_numbers<[1], [0], [0], [1], [0, 0, 1, 1], [], []>} : vector<128x128xbf16>, vector<128x128xbf16>, vector<128x128xf32> -> vector<128x128xf32>
    %34 = arith.addf %33, %15 : vector<128x128xf32>
    %c6_i32 = arith.constant 6 : i32
    %35 = arith.truncf %34 : vector<128x128xf32> to vector<128x128xbf16>
    %cst_20 = arith.constant dense<0.000000e+00> : vector<128x128xf32>
    %36 = tpu.matmul %16, %35, %cst_20 {dimension_numbers = #tpu.dot_dimension_numbers<[1], [0], [0], [1], [0, 0, 1, 1], [], []>} : vector<128x128xbf16>, vector<128x128xbf16>, vector<128x128xf32> -> vector<128x128xf32>
    %37 = arith.addf %36, %15 : vector<128x128xf32>
    %c7_i32 = arith.constant 7 : i32
    %38 = arith.truncf %37 : vector<128x128xf32> to vector<128x128xbf16>
    %cst_21 = arith.constant dense<0.000000e+00> : vector<128x128xf32>
    %39 = tpu.matmul %16, %38, %cst_21 {dimension_numbers = #tpu.dot_dimension_numbers<[1], [0], [0], [1], [0, 0, 1, 1], [], []>} : vector<128x128xbf16>, vector<128x128xbf16>, vector<128x128xf32> -> vector<128x128xf32>
    %40 = arith.addf %39, %15 : vector<128x128xf32>
    %c8_i32 = arith.constant 8 : i32
    %41 = arith.truncf %40 : vector<128x128xf32> to vector<128x128xbf16>
    %cst_22 = arith.constant dense<0.000000e+00> : vector<128x128xf32>
    %42 = tpu.matmul %16, %41, %cst_22 {dimension_numbers = #tpu.dot_dimension_numbers<[1], [0], [0], [1], [0, 0, 1, 1], [], []>} : vector<128x128xbf16>, vector<128x128xbf16>, vector<128x128xf32> -> vector<128x128xf32>
    %43 = arith.addf %42, %15 : vector<128x128xf32>
    %c9_i32 = arith.constant 9 : i32
    %44 = arith.truncf %43 : vector<128x128xf32> to vector<128x128xbf16>
    %cst_23 = arith.constant dense<0.000000e+00> : vector<128x128xf32>
    %45 = tpu.matmul %16, %44, %cst_23 {dimension_numbers = #tpu.dot_dimension_numbers<[1], [0], [0], [1], [0, 0, 1, 1], [], []>} : vector<128x128xbf16>, vector<128x128xbf16>, vector<128x128xf32> -> vector<128x128xf32>
    %46 = arith.addf %45, %15 : vector<128x128xf32>
    %c0_24 = arith.constant 0 : index
    %c0_25 = arith.constant 0 : index
    %47 = vector.load %arg7[%c0_24, %c0_25] : memref<128x128xf32, #tpu.memory_space<vmem>>, vector<128x128xf32>
    tpu.vector_store %arg7[%c0_24, %c0_25], %46 {strides = array<i32>} : memref<128x128xf32, #tpu.memory_space<vmem>>, vector<128x128xf32>,
    return
  }
  func.func @transform_0(%arg0: i32) -> (i32, i32) {
    %c0_i32 = arith.constant 0 : i32
    %c0_i32_0 = arith.constant 0 : i32
    %c0_i32_1 = arith.constant 0 : i32
    return %c0_i32, %c0_i32_0 : i32, i32
  }
  func.func @transform_1(%arg0: i32) -> (i32, i32) {
    %c0_i32 = arith.constant 0 : i32
    %c0_i32_0 = arith.constant 0 : i32
    %c0_i32_1 = arith.constant 0 : i32
    return %c0_i32, %c0_i32_0 : i32, i32
  }
  func.func @transform_2(%arg0: i32) -> (i32, i32) {
    %c0_i32 = arith.constant 0 : i32
    %c0_i32_0 = arith.constant 0 : i32
    %c0_i32_1 = arith.constant 0 : i32
    return %c0_i32, %c0_i32_0 : i32, i32
  }
  func.func @transform_3(%arg0: i32) -> (i32, i32) {
    %c0_i32 = arith.constant 0 : i32
    %c0_i32_0 = arith.constant 0 : i32
    %c0_i32_1 = arith.constant 0 : i32
    return %c0_i32, %c0_i32_0 : i32, i32
  }
  func.func @transform_4(%arg0: i32) -> (i32, i32) {
    %c0_i32 = arith.constant 0 : i32
    %c0_i32_0 = arith.constant 0 : i32
    %c0_i32_1 = arith.constant 0 : i32
    return %c0_i32, %c0_i32_0 : i32, i32
  }
  func.func @transform_5(%arg0: i32) -> (i32, i32) {
    %c0_i32 = arith.constant 0 : i32
    %c0_i32_0 = arith.constant 0 : i32
    %c0_i32_1 = arith.constant 0 : i32
    return %c0_i32, %c0_i32_0 : i32, i32
  }
  func.func @transform_6(%arg0: i32) -> (i32, i32) {
    %c0_i32 = arith.constant 0 : i32
    %c0_i32_0 = arith.constant 0 : i32
    %c0_i32_1 = arith.constant 0 : i32
    return %c0_i32, %c0_i32_0 : i32, i32
  }
}

</mosaic_0001>

<llo_original>
// kernel: tpu_custom_call.1
$region0: #{tpu_custom_call.1}
  #allocation0 [shape = 'u32[]', space=smem, size = 0x4, offset = 0x4, fixed_abs, tag = 'smem constant byte address 0x4 - core index']
  #allocation1 [shape = 'u32[144,128]{1,0:T(1,128)}', space=vmem, size = 0x12000, scoped, tag = 'internal scratch']
  %s0 = inlined_call_operand.hbm [shape: bf16[128,128], index: 0, kind: input, shape index: {}]
  %s1 = inlined_call_operand.hbm [shape: bf16[128,128], index: 1, kind: input, shape index: {}]
  %s2 = inlined_call_operand.vmem [shape: f32[1,128], index: 2, kind: input, shape index: {}]
  %s3 = inlined_call_operand.hbm [shape: bf16[128,128], index: 3, kind: input, shape index: {}]
  %s4 = inlined_call_operand.vmem [shape: f32[1,128], index: 4, kind: input, shape index: {}]
  %s5 = inlined_call_operand.hbm [shape: bf16[128,128], index: 5, kind: input, shape index: {}]
  %s6 = inlined_call_operand.hbm [shape: f32[128,128], index: 6, kind: output, shape index: {}]
  %s7 = sld [smem:[#allocation0]]
  $region50: #{tpu_custom_call.1} parent=0
    _
  %s9 = ssub.s32 1, %s7
  %s10 = scalar_select 0, %s9, %s7
  $region1: #{tpu_custom_call.1} parent=0
    #allocation2 [shape = 'u8[32768]{0}', space=vmem, size = 0x8000, scoped, tag = 'input window, operand 0, single buffered']
    #allocation3 [shape = 's32[1]{0}', space=sflag, size = 0x4, scoped, tag = 'scoped memory for tpu_custom_call.1']
    #allocation4 [shape = 's32[1]{0}', space=sflag, size = 0x4, scoped, tag = 'scoped memory for tpu_custom_call.1']
    #allocation5 [shape = 'u8[32768]{0}', space=vmem, size = 0x8000, scoped, tag = 'input window, operand 1, single buffered']
    #allocation6 [shape = 's32[1]{0}', space=sflag, size = 0x4, scoped, tag = 'scoped memory for tpu_custom_call.1']
    #allocation7 [shape = 'u8[32768]{0}', space=vmem, size = 0x8000, scoped, tag = 'input window, operand 3, single buffered']
    #allocation8 [shape = 'u8[32768]{0}', space=vmem, size = 0x8000, scoped, tag = 'input window, operand 5, single buffered']
    #allocation9 [shape = 's32[1]{0}', space=sflag, size = 0x4, scoped, tag = 'scoped memory for tpu_custom_call.1']
    #allocation10 [shape = 'u8[65536]{0}', space=vmem, size = 0x10000, scoped, tag = 'output window, operand 0, single buffered']
    %11 = vsyncpa [#allocation3], 0
    %12 = vsyncpa [#allocation6], 0
    %13 = vsyncpa [#allocation9], 0
    %14 = vsyncpa [#allocation4], 0
    // Predicated region
    $region2: #{tpu_custom_call.1} parent=1 // pred_check
      _
    $region3: #{tpu_custom_call.1} parent=1 // pred_check_branch
      %16 = sbr.rel (0) target = $region5
    $region4: #{tpu_custom_call.1} parent=1 // pred_region
      %s18 = ssub.s32 1024, 1024
      %19 = vsyncadd [#allocation3], %s18
      %s20 = sshll.u32 [#allocation2], 4
      %s21 = int_to_ptr.vmem [resolvable:$true] %s20
      %26 = dma.hbm_to_vmem [thread:$0]  %s0, 1024, %s21, [#allocation3], 64, 64, 4
    $region5: #{tpu_custom_call.1} parent=1 // pred_fallthru
      _
    // Predicated region
    $region6: #{tpu_custom_call.1} parent=1 // pred_check
      _
    $region7: #{tpu_custom_call.1} parent=1 // pred_check_branch
      %28 = sbr.rel (0) target = $region9
    $region8: #{tpu_custom_call.1} parent=1 // pred_region
      %s30 = ssub.s32 1024, 1024
      %31 = vsyncadd [#allocation6], %s30
      %s32 = sshll.u32 [#allocation5], 4
      %s33 = int_to_ptr.vmem [resolvable:$true] %s32
      %38 = dma.hbm_to_vmem [thread:$0]  %s1, 1024, %s33, [#allocation6], 64, 64, 4
    $region9: #{tpu_custom_call.1} parent=1 // pred_fallthru
      _
    // Predicated region
    $region10: #{tpu_custom_call.1} parent=1 // pred_check
      _
    $region11: #{tpu_custom_call.1} parent=1 // pred_check_branch
      %40 = sbr.rel (0) target = $region13
    $region12: #{tpu_custom_call.1} parent=1 // pred_region
      _
    $region13: #{tpu_custom_call.1} parent=1 // pred_fallthru
      _
    // Predicated region
    $region14: #{tpu_custom_call.1} parent=1 // pred_check
      _
    $region15: #{tpu_custom_call.1} parent=1 // pred_check_branch
      %42 = sbr.rel (0) target = $region17
    $region16: #{tpu_custom_call.1} parent=1 // pred_region
      %s44 = ssub.s32 1024, 1024
      %45 = vsyncadd [#allocation6], %s44
      %s46 = sshll.u32 [#allocation7], 4
      %s47 = int_to_ptr.vmem [resolvable:$true] %s46
      %52 = dma.hbm_to_vmem [thread:$0]  %s3, 1024, %s47, [#allocation6], 64, 64, 4
    $region17: #{tpu_custom_call.1} parent=1 // pred_fallthru
      _
    // Predicated region
    $region18: #{tpu_custom_call.1} parent=1 // pred_check
      _
    $region19: #{tpu_custom_call.1} parent=1 // pred_check_branch
      %54 = sbr.rel (0) target = $region21
    $region20: #{tpu_custom_call.1} parent=1 // pred_region
      _
    $region21: #{tpu_custom_call.1} parent=1 // pred_fallthru
      _
    // Predicated region
    $region22: #{tpu_custom_call.1} parent=1 // pred_check
      _
    $region23: #{tpu_custom_call.1} parent=1 // pred_check_branch
      %56 = sbr.rel (0) target = $region25
    $region24: #{tpu_custom_call.1} parent=1 // pred_region
      %s58 = ssub.s32 1024, 1024
      %59 = vsyncadd [#allocation9], %s58
      %s60 = sshll.u32 [#allocation8], 4
      %s61 = int_to_ptr.vmem [resolvable:$true] %s60
      %66 = dma.hbm_to_vmem [thread:$0]  %s5, 1024, %s61, [#allocation9], 64, 64, 4
    $region25: #{tpu_custom_call.1} parent=1 // pred_fallthru
      _
    // Predicated region
    $region26: #{tpu_custom_call.1} parent=1 // pred_check
      _
    $region27: #{tpu_custom_call.1} parent=1 // pred_check_branch
      %68 = sbr.rel (0) target = $region29
    $region28: #{tpu_custom_call.1} parent=1 // pred_region
      %69 = dma.done [#allocation3], 1024
    $region29: #{tpu_custom_call.1} parent=1 // pred_fallthru
      _
    // Predicated region
    $region30: #{tpu_custom_call.1} parent=1 // pred_check
      _
    $region31: #{tpu_custom_call.1} parent=1 // pred_check_branch
      %71 = sbr.rel (0) target = $region33
    $region32: #{tpu_custom_call.1} parent=1 // pred_region
      %72 = dma.done [#allocation6], 1024
    $region33: #{tpu_custom_call.1} parent=1 // pred_fallthru
      _
    // Predicated region
    $region34: #{tpu_custom_call.1} parent=1 // pred_check
      _
    $region35: #{tpu_custom_call.1} parent=1 // pred_check_branch
      %74 = sbr.rel (0) target = $region37
    $region36: #{tpu_custom_call.1} parent=1 // pred_region
      %75 = dma.done [#allocation6], 1024
    $region37: #{tpu_custom_call.1} parent=1 // pred_fallthru
      _
    // Predicated region
    $region38: #{tpu_custom_call.1} parent=1 // pred_check
      _
    $region39: #{tpu_custom_call.1} parent=1 // pred_check_branch
      %77 = sbr.rel (0) target = $region41
    $region40: #{tpu_custom_call.1} parent=1 // pred_region
      %78 = dma.done [#allocation9], 1024
    $region41: #{tpu_custom_call.1} parent=1 // pred_fallthru
      _
    %v80 = vld [vmem:[#allocation2] sm:$0xf]
    %v81 = vld [vmem:[#allocation2 + $0x4] sm:$0xf]
    %v82 = vld [vmem:[#allocation2 + $0x8] sm:$0xf]
    %v83 = vld [vmem:[#allocation2 + $0xc] sm:$0xf]
    %v84 = vld [vmem:[#allocation2 + $0x10] sm:$0xf]
    %v85 = vld [vmem:[#allocation2 + $0x14] sm:$0xf]
    %v86 = vld [vmem:[#allocation2 + $0x18] sm:$0xf]
    %v87 = vld [vmem:[#allocation2 + $0x1c] sm:$0xf]
    %v88 = vld [vmem:[#allocation2 + $0x20] sm:$0xf]
    %v89 = vld [vmem:[#allocation2 + $0x24] sm:$0xf]
    %v90 = vld [vmem:[#allocation2 + $0x28] sm:$0xf]
    %v91 = vld [vmem:[#allocation2 + $0x2c] sm:$0xf]
    %v92 = vld [vmem:[#allocation2 + $0x30] sm:$0xf]
    %v93 = vld [vmem:[#allocation2 + $0x34] sm:$0xf]
    %v94 = vld [vmem:[#allocation2 + $0x38] sm:$0xf]
    %v95 = vld [vmem:[#allocation2 + $0x3c] sm:$0xf]
    %v96 = vld [vmem:[#allocation5] sm:$0xf]
    %v97 = vld [vmem:[#allocation5 + $0x4] sm:$0xf]
    %v98 = vld [vmem:[#allocation5 + $0x8] sm:$0xf]
    %v99 = vld [vmem:[#allocation5 + $0xc] sm:$0xf]
    %v100 = vld [vmem:[#allocation5 + $0x10] sm:$0xf]
    %v101 = vld [vmem:[#allocation5 + $0x14] sm:$0xf]
    %v102 = vld [vmem:[#allocation5 + $0x18] sm:$0xf]
    %v103 = vld [vmem:[#allocation5 + $0x1c] sm:$0xf]
    %v104 = vld [vmem:[#allocation5 + $0x20] sm:$0xf]
    %v105 = vld [vmem:[#allocation5 + $0x24] sm:$0xf]
    %v106 = vld [vmem:[#allocation5 + $0x28] sm:$0xf]
    %v107 = vld [vmem:[#allocation5 + $0x2c] sm:$0xf]
    %v108 = vld [vmem:[#allocation5 + $0x30] sm:$0xf]
    %v109 = vld [vmem:[#allocation5 + $0x34] sm:$0xf]
    %v110 = vld [vmem:[#allocation5 + $0x38] sm:$0xf]
    %v111 = vld [vmem:[#allocation5 + $0x3c] sm:$0xf]
    %v112 = vld [vmem:[%s2] sm:$0x1]
    %v114 = vlaneseq
    %v115 = vshrl.u32 %v114, 7
    %v116 = vsub.s32 0, %v115
    %v117 = vrot.slane %v112, %v116
    %v135 = vunpack.c.l.b16 %v80
    %v136 = vunpack.c.l.b16 %v81
    %v137 = vunpack.c.l.b16 %v82
    %v138 = vunpack.c.l.b16 %v83
    %v139 = vunpack.c.l.b16 %v84
    %v140 = vunpack.c.l.b16 %v85
    %v141 = vunpack.c.l.b16 %v86
    %v142 = vunpack.c.l.b16 %v87
    %v143 = vunpack.c.l.b16 %v88
    %v144 = vunpack.c.l.b16 %v89
    %v145 = vunpack.c.l.b16 %v90
    %v146 = vunpack.c.l.b16 %v91
    %v147 = vunpack.c.l.b16 %v92
    %v148 = vunpack.c.l.b16 %v93
    %v149 = vunpack.c.l.b16 %v94
    %v150 = vunpack.c.l.b16 %v95
    %v151 = vpack.c.b16 %v136, %v135
    %v152 = vpack.c.b16 %v138, %v137
    %v153 = vpack.c.b16 %v140, %v139
    %v154 = vpack.c.b16 %v142, %v141
    %v155 = vpack.c.b16 %v144, %v143
    %v156 = vpack.c.b16 %v146, %v145
    %v157 = vpack.c.b16 %v148, %v147
    %v158 = vpack.c.b16 %v150, %v149
    %v183 = vunpack.c.l.b16 %v96
    %v184 = vunpack.c.l.b16 %v97
    %v185 = vunpack.c.l.b16 %v98
    %v186 = vunpack.c.l.b16 %v99
    %v187 = vunpack.c.l.b16 %v100
    %v188 = vunpack.c.l.b16 %v101
    %v189 = vunpack.c.l.b16 %v102
    %v190 = vunpack.c.l.b16 %v103
    %v191 = vunpack.c.l.b16 %v104
    %v192 = vunpack.c.l.b16 %v105
    %v193 = vunpack.c.l.b16 %v106
    %v194 = vunpack.c.l.b16 %v107
    %v195 = vunpack.c.l.b16 %v108
    %v196 = vunpack.c.l.b16 %v109
    %v197 = vunpack.c.l.b16 %v110
    %v198 = vunpack.c.l.b16 %v111
    %v199 = vpack.c.b16 %v184, %v183
    %v200 = vpack.c.b16 %v186, %v185
    %v201 = vpack.c.b16 %v188, %v187
    %v202 = vpack.c.b16 %v190, %v189
    %v203 = vpack.c.b16 %v192, %v191
    %v204 = vpack.c.b16 %v194, %v193
    %v205 = vpack.c.b16 %v196, %v195
    %v206 = vpack.c.b16 %v198, %v197
    %215 = vmatprep.subr.bf16.mxu0 0
    %216 = vmatpush1.bf16.msra.mxu0 %v206
    %217 = vmatprep.subr.bf16.mxu0 0
    %218 = vmatpush1.bf16.msra.mxu0 %v205
    %219 = vmatprep.subr.bf16.mxu0 0
    %220 = vmatpush1.bf16.msra.mxu0 %v204
    %221 = vmatprep.subr.bf16.mxu0 0
    %222 = vmatpush1.bf16.msra.mxu0 %v203
    %223 = vmatprep.subr.bf16.mxu0 0
    %224 = vmatpush1.bf16.msra.mxu0 %v202
    %225 = vmatprep.subr.bf16.mxu0 0
    %226 = vmatpush1.bf16.msra.mxu0 %v201
    %227 = vmatprep.subr.bf16.mxu0 0
    %228 = vmatpush1.bf16.msra.mxu0 %v200
    %229 = vmatprep.subr.bf16.mxu0 0
    %230 = vmatpush1.bf16.msra.mxu0 %v199
    %231 = vmatprep.subr.bf16.mxu0 0
    %232 = vmatpush2.bf16.msra.mxu0 0
    %233 = vmatprep.subr.bf16.mxu0 0
    %234 = vmatpush2.bf16.msra.mxu0 0
    %235 = vmatprep.subr.bf16.mxu0 0
    %236 = vmatpush2.bf16.msra.mxu0 0
    %237 = vmatprep.subr.bf16.mxu0 0
    %238 = vmatpush2.bf16.msra.mxu0 0
    %239 = vmatprep.subr.bf16.mxu0 0
    %240 = vmatpush2.bf16.msra.mxu0 0
    %241 = vmatprep.subr.bf16.mxu0 0
    %242 = vmatpush2.bf16.msra.mxu0 0
    %243 = vmatprep.subr.bf16.mxu0 0
    %244 = vmatpush2.bf16.msra.mxu0 0
    %245 = vmatprep.subr.bf16.mxu0 0
    %246 = vmatpush2.bf16.msra.mxu0 0
    %247 = vmatprep.mubr.bf16.mxu0 0
    %248 = vmatmul.mubr.bf16.gmra.mxu0 %v151
    %v249 = vpop.f32.mrf.mxu0
    %v250 = vadd.f32 %v117, %v249
    %v251 = vpop.f32.mrf.mxu0
    %v252 = vpop.f32.mrf.mxu0
    %v253 = vadd.f32 %v117, %v252
    %v254 = vpop.f32.mrf.mxu0
    %255 = vmatprep.mubr.bf16.mxu0 0
    %256 = vmatmul.mubr.bf16.gmra.mxu0 %v152
    %v257 = vpop.f32.mrf.mxu0
    %v258 = vadd.f32 %v117, %v257
    %v259 = vpop.f32.mrf.mxu0
    %v260 = vpop.f32.mrf.mxu0
    %v261 = vadd.f32 %v117, %v260
    %v262 = vpop.f32.mrf.mxu0
    %263 = vmatprep.mubr.bf16.mxu0 0
    %264 = vmatmul.mubr.bf16.gmra.mxu0 %v153
    %v265 = vpop.f32.mrf.mxu0
    %v266 = vadd.f32 %v117, %v265
    %v267 = vpop.f32.mrf.mxu0
    %v268 = vpop.f32.mrf.mxu0
    %v269 = vadd.f32 %v117, %v268
    %v270 = vpop.f32.mrf.mxu0
    %271 = vmatprep.mubr.bf16.mxu0 0
    %272 = vmatmul.mubr.bf16.gmra.mxu0 %v154
    %v273 = vpop.f32.mrf.mxu0
    %v274 = vadd.f32 %v117, %v273
    %v275 = vpop.f32.mrf.mxu0
    %v276 = vpop.f32.mrf.mxu0
    %v277 = vadd.f32 %v117, %v276
    %v278 = vpop.f32.mrf.mxu0
    %279 = vmatprep.mubr.bf16.mxu0 0
    %280 = vmatmul.mubr.bf16.gmra.mxu0 %v155
    %v281 = vpop.f32.mrf.mxu0
    %v282 = vadd.f32 %v117, %v281
    %v283 = vpop.f32.mrf.mxu0
    %v284 = vpop.f32.mrf.mxu0
    %v285 = vadd.f32 %v117, %v284
    %v286 = vpop.f32.mrf.mxu0
    %287 = vmatprep.mubr.bf16.mxu0 0
    %288 = vmatmul.mubr.bf16.gmra.mxu0 %v156
    %v289 = vpop.f32.mrf.mxu0
    %v290 = vadd.f32 %v117, %v289
    %v291 = vpop.f32.mrf.mxu0
    %v292 = vpop.f32.mrf.mxu0
    %v293 = vadd.f32 %v117, %v292
    %v294 = vpop.f32.mrf.mxu0
    %295 = vmatprep.mubr.bf16.mxu0 0
    %296 = vmatmul.mubr.bf16.gmra.mxu0 %v157
    %v297 = vpop.f32.mrf.mxu0
    %v298 = vadd.f32 %v117, %v297
    %v299 = vpop.f32.mrf.mxu0
    %v300 = vpop.f32.mrf.mxu0
    %v301 = vadd.f32 %v117, %v300
    %v302 = vpop.f32.mrf.mxu0
    %303 = vmatprep.mubr.bf16.mxu0 0
    %304 = vmatmul.mubr.bf16.gmra.mxu0 %v158
    %v305 = vpop.f32.mrf.mxu0
    %v306 = vadd.f32 %v117, %v305
    %v307 = vpop.f32.mrf.mxu0
    %v308 = vpop.f32.mrf.mxu0
    %v309 = vadd.f32 %v117, %v308
    %v310 = vpop.f32.mrf.mxu0
    %311 = vdwg.mxu0
    %v312 = vmax.f32 %v250, 0.0
    %v313 = vmax.f32 %v253, 0.0
    %v314 = vmax.f32 %v258, 0.0
    %v315 = vmax.f32 %v261, 0.0
    %v316 = vmax.f32 %v266, 0.0
    %v317 = vmax.f32 %v269, 0.0
    %v318 = vmax.f32 %v274, 0.0
    %v319 = vmax.f32 %v277, 0.0
    %v320 = vmax.f32 %v282, 0.0
    %v321 = vmax.f32 %v285, 0.0
    %v322 = vmax.f32 %v290, 0.0
    %v323 = vmax.f32 %v293, 0.0
    %v324 = vmax.f32 %v298, 0.0
    %v325 = vmax.f32 %v301, 0.0
    %v326 = vmax.f32 %v306, 0.0
    %v327 = vmax.f32 %v309, 0.0
    %v328 = vpack.c.bf16 %v313, %v312
    %v329 = vpack.c.bf16 %v315, %v314
    %v330 = vpack.c.bf16 %v317, %v316
    %v331 = vpack.c.bf16 %v319, %v318
    %v332 = vpack.c.bf16 %v321, %v320
    %v333 = vpack.c.bf16 %v323, %v322
    %v334 = vpack.c.bf16 %v325, %v324
    %v335 = vpack.c.bf16 %v327, %v326
    %v336 = vld [vmem:[#allocation7] sm:$0xf]
    %v337 = vld [vmem:[#allocation7 + $0x4] sm:$0xf]
    %v338 = vld [vmem:[#allocation7 + $0x8] sm:$0xf]
    %v339 = vld [vmem:[#allocation7 + $0xc] sm:$0xf]
    %v340 = vld [vmem:[#allocation7 + $0x10] sm:$0xf]
    %v341 = vld [vmem:[#allocation7 + $0x14] sm:$0xf]
    %v342 = vld [vmem:[#allocation7 + $0x18] sm:$0xf]
    %v343 = vld [vmem:[#allocation7 + $0x1c] sm:$0xf]
    %v344 = vld [vmem:[#allocation7 + $0x20] sm:$0xf]
    %v345 = vld [vmem:[#allocation7 + $0x24] sm:$0xf]
    %v346 = vld [vmem:[#allocation7 + $0x28] sm:$0xf]
    %v347 = vld [vmem:[#allocation7 + $0x2c] sm:$0xf]
    %v348 = vld [vmem:[#allocation7 + $0x30] sm:$0xf]
    %v349 = vld [vmem:[#allocation7 + $0x34] sm:$0xf]
    %v350 = vld [vmem:[#allocation7 + $0x38] sm:$0xf]
    %v351 = vld [vmem:[#allocation7 + $0x3c] sm:$0xf]
    %v352 = vld [vmem:[%s4] sm:$0x1]
    %v354 = vlaneseq
    %v355 = vshrl.u32 %v354, 7
    %v356 = vsub.s32 0, %v355
    %v357 = vrot.slane %v352, %v356
    %v375 = vunpack.c.l.b16 %v336
    %v376 = vunpack.c.l.b16 %v337
    %v377 = vunpack.c.l.b16 %v338
    %v378 = vunpack.c.l.b16 %v339
    %v379 = vunpack.c.l.b16 %v340
    %v380 = vunpack.c.l.b16 %v341
    %v381 = vunpack.c.l.b16 %v342
    %v382 = vunpack.c.l.b16 %v343
    %v383 = vunpack.c.l.b16 %v344
    %v384 = vunpack.c.l.b16 %v345
    %v385 = vunpack.c.l.b16 %v346
    %v386 = vunpack.c.l.b16 %v347
    %v387 = vunpack.c.l.b16 %v348
    %v388 = vunpack.c.l.b16 %v349
    %v389 = vunpack.c.l.b16 %v350
    %v390 = vunpack.c.l.b16 %v351
    %v391 = vpack.c.b16 %v376, %v375
    %v392 = vpack.c.b16 %v378, %v377
    %v393 = vpack.c.b16 %v380, %v379
    %v394 = vpack.c.b16 %v382, %v381
    %v395 = vpack.c.b16 %v384, %v383
    %v396 = vpack.c.b16 %v386, %v385
    %v397 = vpack.c.b16 %v388, %v387
    %v398 = vpack.c.b16 %v390, %v389
    %407 = vmatprep.subr.bf16.mxu0 0
    %408 = vmatpush1.bf16.msra.mxu0 %v398
    %409 = vmatprep.subr.bf16.mxu0 0
    %410 = vmatpush1.bf16.msra.mxu0 %v397
    %411 = vmatprep.subr.bf16.mxu0 0
    %412 = vmatpush1.bf16.msra.mxu0 %v396
    %413 = vmatprep.subr.bf16.mxu0 0
    %414 = vmatpush1.bf16.msra.mxu0 %v395
    %415 = vmatprep.subr.bf16.mxu0 0
    %416 = vmatpush1.bf16.msra.mxu0 %v394
    %417 = vmatprep.subr.bf16.mxu0 0
    %418 = vmatpush1.bf16.msra.mxu0 %v393
    %419 = vmatprep.subr.bf16.mxu0 0
    %420 = vmatpush1.bf16.msra.mxu0 %v392
    %421 = vmatprep.subr.bf16.mxu0 0
    %422 = vmatpush1.bf16.msra.mxu0 %v391
    %423 = vmatprep.subr.bf16.mxu0 0
    %424 = vmatpush2.bf16.msra.mxu0 0
    %425 = vmatprep.subr.bf16.mxu0 0
    %426 = vmatpush2.bf16.msra.mxu0 0
    %427 = vmatprep.subr.bf16.mxu0 0
    %428 = vmatpush2.bf16.msra.mxu0 0
    %429 = vmatprep.subr.bf16.mxu0 0
    %430 = vmatpush2.bf16.msra.mxu0 0
    %431 = vmatprep.subr.bf16.mxu0 0
    %432 = vmatpush2.bf16.msra.mxu0 0
    %433 = vmatprep.subr.bf16.mxu0 0
    %434 = vmatpush2.bf16.msra.mxu0 0
    %435 = vmatprep.subr.bf16.mxu0 0
    %436 = vmatpush2.bf16.msra.mxu0 0
    %437 = vmatprep.subr.bf16.mxu0 0
    %438 = vmatpush2.bf16.msra.mxu0 0
    %439 = vmatprep.mubr.bf16.mxu0 0
    %440 = vmatmul.mubr.bf16.gmra.mxu0 %v328
    %v441 = vpop.f32.mrf.mxu0
    %v442 = vadd.f32 %v357, %v441
    %v443 = vpop.f32.mrf.mxu0
    %v444 = vpop.f32.mrf.mxu0
    %v445 = vadd.f32 %v357, %v444
    %v446 = vpop.f32.mrf.mxu0
    %447 = vmatprep.mubr.bf16.mxu0 0
    %448 = vmatmul.mubr.bf16.gmra.mxu0 %v329
    %v449 = vpop.f32.mrf.mxu0
    %v450 = vadd.f32 %v357, %v449
    %v451 = vpop.f32.mrf.mxu0
    %v452 = vpop.f32.mrf.mxu0
    %v453 = vadd.f32 %v357, %v452
    %v454 = vpop.f32.mrf.mxu0
    %455 = vmatprep.mubr.bf16.mxu0 0
    %456 = vmatmul.mubr.bf16.gmra.mxu0 %v330
    %v457 = vpop.f32.mrf.mxu0
    %v458 = vadd.f32 %v357, %v457
    %v459 = vpop.f32.mrf.mxu0
    %v460 = vpop.f32.mrf.mxu0
    %v461 = vadd.f32 %v357, %v460
    %v462 = vpop.f32.mrf.mxu0
    %463 = vmatprep.mubr.bf16.mxu0 0
    %464 = vmatmul.mubr.bf16.gmra.mxu0 %v331
    %v465 = vpop.f32.mrf.mxu0
    %v466 = vadd.f32 %v357, %v465
    %v467 = vpop.f32.mrf.mxu0
    %v468 = vpop.f32.mrf.mxu0
    %v469 = vadd.f32 %v357, %v468
    %v470 = vpop.f32.mrf.mxu0
    %471 = vmatprep.mubr.bf16.mxu0 0
    %472 = vmatmul.mubr.bf16.gmra.mxu0 %v332
    %v473 = vpop.f32.mrf.mxu0
    %v474 = vadd.f32 %v357, %v473
    %v475 = vpop.f32.mrf.mxu0
    %v476 = vpop.f32.mrf.mxu0
    %v477 = vadd.f32 %v357, %v476
    %v478 = vpop.f32.mrf.mxu0
    %479 = vmatprep.mubr.bf16.mxu0 0
    %480 = vmatmul.mubr.bf16.gmra.mxu0 %v333
    %v481 = vpop.f32.mrf.mxu0
    %v482 = vadd.f32 %v357, %v481
    %v483 = vpop.f32.mrf.mxu0
    %v484 = vpop.f32.mrf.mxu0
    %v485 = vadd.f32 %v357, %v484
    %v486 = vpop.f32.mrf.mxu0
    %487 = vmatprep.mubr.bf16.mxu0 0
    %488 = vmatmul.mubr.bf16.gmra.mxu0 %v334
    %v489 = vpop.f32.mrf.mxu0
    %v490 = vadd.f32 %v357, %v489
    %v491 = vpop.f32.mrf.mxu0
    %v492 = vpop.f32.mrf.mxu0
    %v493 = vadd.f32 %v357, %v492
    %v494 = vpop.f32.mrf.mxu0
    %495 = vmatprep.mubr.bf16.mxu0 0
    %496 = vmatmul.mubr.bf16.gmra.mxu0 %v335
    %v497 = vpop.f32.mrf.mxu0
    %v498 = vadd.f32 %v357, %v497
    %v499 = vpop.f32.mrf.mxu0
    %v500 = vpop.f32.mrf.mxu0
    %v501 = vadd.f32 %v357, %v500
    %v502 = vpop.f32.mrf.mxu0
    %503 = vdwg.mxu0
    %v504 = vmul.f32 %v442, 0.1
    %v505 = vmul.f32 %v445, 0.1
    %v506 = vmul.f32 %v450, 0.1
    %v507 = vmul.f32 %v453, 0.1
    %v508 = vmul.f32 %v458, 0.1
    %v509 = vmul.f32 %v461, 0.1
    %v510 = vmul.f32 %v466, 0.1
    %v511 = vmul.f32 %v469, 0.1
    %v512 = vmul.f32 %v474, 0.1
    %v513 = vmul.f32 %v477, 0.1
    %v514 = vmul.f32 %v482, 0.1
    %v515 = vmul.f32 %v485, 0.1
    %v516 = vmul.f32 %v490, 0.1
    %v517 = vmul.f32 %v493, 0.1
    %v518 = vmul.f32 %v498, 0.1
    %v519 = vmul.f32 %v501, 0.1
    %v520 = vld [vmem:[#allocation8] sm:$0xf]
    %v521 = vld [vmem:[#allocation8 + $0x4] sm:$0xf]
    %v522 = vld [vmem:[#allocation8 + $0x8] sm:$0xf]
    %v523 = vld [vmem:[#allocation8 + $0xc] sm:$0xf]
    %v524 = vld [vmem:[#allocation8 + $0x10] sm:$0xf]
    %v525 = vld [vmem:[#allocation8 + $0x14] sm:$0xf]
    %v526 = vld [vmem:[#allocation8 + $0x18] sm:$0xf]
    %v527 = vld [vmem:[#allocation8 + $0x1c] sm:$0xf]
    %v528 = vld [vmem:[#allocation8 + $0x20] sm:$0xf]
    %v529 = vld [vmem:[#allocation8 + $0x24] sm:$0xf]
    %v530 = vld [vmem:[#allocation8 + $0x28] sm:$0xf]
    %v531 = vld [vmem:[#allocation8 + $0x2c] sm:$0xf]
    %v532 = vld [vmem:[#allocation8 + $0x30] sm:$0xf]
    %v533 = vld [vmem:[#allocation8 + $0x34] sm:$0xf]
    %v534 = vld [vmem:[#allocation8 + $0x38] sm:$0xf]
    %v535 = vld [vmem:[#allocation8 + $0x3c] sm:$0xf]
    %v536 = vpack.c.bf16 %v445, %v442
    %v537 = vpack.c.bf16 %v453, %v450
    %v538 = vpack.c.bf16 %v461, %v458
    %v539 = vpack.c.bf16 %v469, %v466
    %v540 = vpack.c.bf16 %v477, %v474
    %v541 = vpack.c.bf16 %v485, %v482
    %v542 = vpack.c.bf16 %v493, %v490
    %v543 = vpack.c.bf16 %v501, %v498
    %v560 = vunpack.c.l.b16 %v520
    %v561 = vunpack.c.l.b16 %v521
    %v562 = vunpack.c.l.b16 %v522
    %v563 = vunpack.c.l.b16 %v523
    %v564 = vunpack.c.l.b16 %v524
    %v565 = vunpack.c.l.b16 %v525
    %v566 = vunpack.c.l.b16 %v526
    %v567 = vunpack.c.l.b16 %v527
    %v568 = vunpack.c.l.b16 %v528
    %v569 = vunpack.c.l.b16 %v529
    %v570 = vunpack.c.l.b16 %v530
    %v571 = vunpack.c.l.b16 %v531
    %v572 = vunpack.c.l.b16 %v532
    %v573 = vunpack.c.l.b16 %v533
    %v574 = vunpack.c.l.b16 %v534
    %v575 = vunpack.c.l.b16 %v535
    %v576 = vpack.c.b16 %v561, %v560
    %v577 = vpack.c.b16 %v563, %v562
    %v578 = vpack.c.b16 %v565, %v564
    %v579 = vpack.c.b16 %v567, %v566
    %v580 = vpack.c.b16 %v569, %v568
    %v581 = vpack.c.b16 %v571, %v570
    %v582 = vpack.c.b16 %v573, %v572
    %v583 = vpack.c.b16 %v575, %v574
    %592 = vmatprep.subr.bf16.mxu0 0
    %593 = vmatpush1.bf16.msra.mxu0 %v543
    %594 = vmatprep.subr.bf16.mxu0 0
    %595 = vmatpush1.bf16.msra.mxu0 %v542
    %596 = vmatprep.subr.bf16.mxu0 0
    %597 = vmatpush1.bf16.msra.mxu0 %v541
    %598 = vmatprep.subr.bf16.mxu0 0
    %599 = vmatpush1.bf16.msra.mxu0 %v540
    %600 = vmatprep.subr.bf16.mxu0 0
    %601 = vmatpush1.bf16.msra.mxu0 %v539
    %602 = vmatprep.subr.bf16.mxu0 0
    %603 = vmatpush1.bf16.msra.mxu0 %v538
    %604 = vmatprep.subr.bf16.mxu0 0
    %605 = vmatpush1.bf16.msra.mxu0 %v537
    %606 = vmatprep.subr.bf16.mxu0 0
    %607 = vmatpush1.bf16.msra.mxu0 %v536
    %608 = vmatprep.subr.bf16.mxu0 0
    %609 = vmatpush2.bf16.msra.mxu0 0
    %610 = vmatprep.subr.bf16.mxu0 0
    %611 = vmatpush2.bf16.msra.mxu0 0
    %612 = vmatprep.subr.bf16.mxu0 0
    %613 = vmatpush2.bf16.msra.mxu0 0
    %614 = vmatprep.subr.bf16.mxu0 0
    %615 = vmatpush2.bf16.msra.mxu0 0
    %616 = vmatprep.subr.bf16.mxu0 0
    %617 = vmatpush2.bf16.msra.mxu0 0
    %618 = vmatprep.subr.bf16.mxu0 0
    %619 = vmatpush2.bf16.msra.mxu0 0
    %620 = vmatprep.subr.bf16.mxu0 0
    %621 = vmatpush2.bf16.msra.mxu0 0
    %622 = vmatprep.subr.bf16.mxu0 0
    %623 = vmatpush2.bf16.msra.mxu0 0
    %624 = vmatprep.mubr.bf16.mxu0 0
    %625 = vmatmul.mubr.bf16.gmra.mxu0 %v576
    %v626 = vpop.f32.mrf.mxu0
    %v627 = vadd.f32 %v504, %v626
    %v628 = vpop.f32.mrf.mxu0
    %v629 = vpop.f32.mrf.mxu0
    %v630 = vadd.f32 %v505, %v629
    %v631 = vpop.f32.mrf.mxu0
    %632 = vmatprep.mubr.bf16.mxu0 0
    %633 = vmatmul.mubr.bf16.gmra.mxu0 %v577
    %v634 = vpop.f32.mrf.mxu0
    %v635 = vadd.f32 %v506, %v634
    %v636 = vpop.f32.mrf.mxu0
    %v637 = vpop.f32.mrf.mxu0
    %v638 = vadd.f32 %v507, %v637
    %v639 = vpop.f32.mrf.mxu0
    %640 = vmatprep.mubr.bf16.mxu0 0
    %641 = vmatmul.mubr.bf16.gmra.mxu0 %v578
    %v642 = vpop.f32.mrf.mxu0
    %v643 = vadd.f32 %v508, %v642
    %v644 = vpop.f32.mrf.mxu0
    %v645 = vpop.f32.mrf.mxu0
    %v646 = vadd.f32 %v509, %v645
    %v647 = vpop.f32.mrf.mxu0
    %648 = vmatprep.mubr.bf16.mxu0 0
    %649 = vmatmul.mubr.bf16.gmra.mxu0 %v579
    %v650 = vpop.f32.mrf.mxu0
    %v651 = vadd.f32 %v510, %v650
    %v652 = vpop.f32.mrf.mxu0
    %v653 = vpop.f32.mrf.mxu0
    %v654 = vadd.f32 %v511, %v653
    %v655 = vpop.f32.mrf.mxu0
    %656 = vmatprep.mubr.bf16.mxu0 0
    %657 = vmatmul.mubr.bf16.gmra.mxu0 %v580
    %v658 = vpop.f32.mrf.mxu0
    %v659 = vadd.f32 %v512, %v658
    %v660 = vpop.f32.mrf.mxu0
    %v661 = vpop.f32.mrf.mxu0
    %v662 = vadd.f32 %v513, %v661
    %v663 = vpop.f32.mrf.mxu0
    %664 = vmatprep.mubr.bf16.mxu0 0
    %665 = vmatmul.mubr.bf16.gmra.mxu0 %v581
    %v666 = vpop.f32.mrf.mxu0
    %v667 = vadd.f32 %v514, %v666
    %v668 = vpop.f32.mrf.mxu0
    %v669 = vpop.f32.mrf.mxu0
    %v670 = vadd.f32 %v515, %v669
    %v671 = vpop.f32.mrf.mxu0
    %672 = vmatprep.mubr.bf16.mxu0 0
    %673 = vmatmul.mubr.bf16.gmra.mxu0 %v582
    %v674 = vpop.f32.mrf.mxu0
    %v675 = vadd.f32 %v516, %v674
    %v676 = vpop.f32.mrf.mxu0
    %v677 = vpop.f32.mrf.mxu0
    %v678 = vadd.f32 %v517, %v677
    %v679 = vpop.f32.mrf.mxu0
    %680 = vmatprep.mubr.bf16.mxu0 0
    %681 = vmatmul.mubr.bf16.gmra.mxu0 %v583
    %v682 = vpop.f32.mrf.mxu0
    %v683 = vadd.f32 %v518, %v682
    %v684 = vpop.f32.mrf.mxu0
    %v685 = vpop.f32.mrf.mxu0
    %v686 = vadd.f32 %v519, %v685
    %v687 = vpop.f32.mrf.mxu0
    %688 = vdwg.mxu0
    %v689 = vpack.c.bf16 %v630, %v627
    %v690 = vpack.c.bf16 %v638, %v635
    %v691 = vpack.c.bf16 %v646, %v643
    %v692 = vpack.c.bf16 %v654, %v651
    %v693 = vpack.c.bf16 %v662, %v659
    %v694 = vpack.c.bf16 %v670, %v667
    %v695 = vpack.c.bf16 %v678, %v675
    %v696 = vpack.c.bf16 %v686, %v683
    %697 = vmatprep.subr.bf16.mxu0 0
    %698 = vmatpush1.bf16.msra.mxu0 %v696
    %699 = vmatprep.subr.bf16.mxu0 0
    %700 = vmatpush1.bf16.msra.mxu0 %v695
    %701 = vmatprep.subr.bf16.mxu0 0
    %702 = vmatpush1.bf16.msra.mxu0 %v694
    %703 = vmatprep.subr.bf16.mxu0 0
    %704 = vmatpush1.bf16.msra.mxu0 %v693
    %705 = vmatprep.subr.bf16.mxu0 0
    %706 = vmatpush1.bf16.msra.mxu0 %v692
    %707 = vmatprep.subr.bf16.mxu0 0
    %708 = vmatpush1.bf16.msra.mxu0 %v691
    %709 = vmatprep.subr.bf16.mxu0 0
    %710 = vmatpush1.bf16.msra.mxu0 %v690
    %711 = vmatprep.subr.bf16.mxu0 0
    %712 = vmatpush1.bf16.msra.mxu0 %v689
    %713 = vmatprep.subr.bf16.mxu0 0
    %714 = vmatpush2.bf16.msra.mxu0 0
    %715 = vmatprep.subr.bf16.mxu0 0
    %716 = vmatpush2.bf16.msra.mxu0 0
    %717 = vmatprep.subr.bf16.mxu0 0
    %718 = vmatpush2.bf16.msra.mxu0 0
    %719 = vmatprep.subr.bf16.mxu0 0
    %720 = vmatpush2.bf16.msra.mxu0 0
    %721 = vmatprep.subr.bf16.mxu0 0
    %722 = vmatpush2.bf16.msra.mxu0 0
    %723 = vmatprep.subr.bf16.mxu0 0
    %724 = vmatpush2.bf16.msra.mxu0 0
    %725 = vmatprep.subr.bf16.mxu0 0
    %726 = vmatpush2.bf16.msra.mxu0 0
    %727 = vmatprep.subr.bf16.mxu0 0
    %728 = vmatpush2.bf16.msra.mxu0 0
    %729 = vmatprep.mubr.bf16.mxu0 0
    %730 = vmatmul.mubr.bf16.gmra.mxu0 %v576
    %v731 = vpop.f32.mrf.mxu0
    %v732 = vadd.f32 %v504, %v731
    %v733 = vpop.f32.mrf.mxu0
    %v734 = vpop.f32.mrf.mxu0
    %v735 = vadd.f32 %v505, %v734
    %v736 = vpop.f32.mrf.mxu0
    %737 = vmatprep.mubr.bf16.mxu0 0
    %738 = vmatmul.mubr.bf16.gmra.mxu0 %v577
    %v739 = vpop.f32.mrf.mxu0
    %v740 = vadd.f32 %v506, %v739
    %v741 = vpop.f32.mrf.mxu0
    %v742 = vpop.f32.mrf.mxu0
    %v743 = vadd.f32 %v507, %v742
    %v744 = vpop.f32.mrf.mxu0
    %745 = vmatprep.mubr.bf16.mxu0 0
    %746 = vmatmul.mubr.bf16.gmra.mxu0 %v578
    %v747 = vpop.f32.mrf.mxu0
    %v748 = vadd.f32 %v508, %v747
    %v749 = vpop.f32.mrf.mxu0
    %v750 = vpop.f32.mrf.mxu0
    %v751 = vadd.f32 %v509, %v750
    %v752 = vpop.f32.mrf.mxu0
    %753 = vmatprep.mubr.bf16.mxu0 0
    %754 = vmatmul.mubr.bf16.gmra.mxu0 %v579
    %v755 = vpop.f32.mrf.mxu0
    %v756 = vadd.f32 %v510, %v755
    %v757 = vpop.f32.mrf.mxu0
    %v758 = vpop.f32.mrf.mxu0
    %v759 = vadd.f32 %v511, %v758
    %v760 = vpop.f32.mrf.mxu0
    %761 = vmatprep.mubr.bf16.mxu0 0
    %762 = vmatmul.mubr.bf16.gmra.mxu0 %v580
    %v763 = vpop.f32.mrf.mxu0
    %v764 = vadd.f32 %v512, %v763
    %v765 = vpop.f32.mrf.mxu0
    %v766 = vpop.f32.mrf.mxu0
    %v767 = vadd.f32 %v513, %v766
    %v768 = vpop.f32.mrf.mxu0
    %769 = vmatprep.mubr.bf16.mxu0 0
    %770 = vmatmul.mubr.bf16.gmra.mxu0 %v581
    %v771 = vpop.f32.mrf.mxu0
    %v772 = vadd.f32 %v514, %v771
    %v773 = vpop.f32.mrf.mxu0
    %v774 = vpop.f32.mrf.mxu0
    %v775 = vadd.f32 %v515, %v774
    %v776 = vpop.f32.mrf.mxu0
    %777 = vmatprep.mubr.bf16.mxu0 0
    %778 = vmatmul.mubr.bf16.gmra.mxu0 %v582
    %v779 = vpop.f32.mrf.mxu0
    %v780 = vadd.f32 %v516, %v779
    %v781 = vpop.f32.mrf.mxu0
    %v782 = vpop.f32.mrf.mxu0
    %v783 = vadd.f32 %v517, %v782
    %v784 = vpop.f32.mrf.mxu0
    %785 = vmatprep.mubr.bf16.mxu0 0
    %786 = vmatmul.mubr.bf16.gmra.mxu0 %v583
    %v787 = vpop.f32.mrf.mxu0
    %v788 = vadd.f32 %v518, %v787
    %v789 = vpop.f32.mrf.mxu0
    %v790 = vpop.f32.mrf.mxu0
    %v791 = vadd.f32 %v519, %v790
    %v792 = vpop.f32.mrf.mxu0
    %793 = vdwg.mxu0
    %v794 = vpack.c.bf16 %v735, %v732
    %v795 = vpack.c.bf16 %v743, %v740
    %v796 = vpack.c.bf16 %v751, %v748
    %v797 = vpack.c.bf16 %v759, %v756
    %v798 = vpack.c.bf16 %v767, %v764
    %v799 = vpack.c.bf16 %v775, %v772
    %v800 = vpack.c.bf16 %v783, %v780
    %v801 = vpack.c.bf16 %v791, %v788
    %802 = vmatprep.subr.bf16.mxu0 0
    %803 = vmatpush1.bf16.msra.mxu0 %v801
    %804 = vmatprep.subr.bf16.mxu0 0
    %805 = vmatpush1.bf16.msra.mxu0 %v800
    %806 = vmatprep.subr.bf16.mxu0 0
    %807 = vmatpush1.bf16.msra.mxu0 %v799
    %808 = vmatprep.subr.bf16.mxu0 0
    %809 = vmatpush1.bf16.msra.mxu0 %v798
    %810 = vmatprep.subr.bf16.mxu0 0
    %811 = vmatpush1.bf16.msra.mxu0 %v797
    %812 = vmatprep.subr.bf16.mxu0 0
    %813 = vmatpush1.bf16.msra.mxu0 %v796
    %814 = vmatprep.subr.bf16.mxu0 0
    %815 = vmatpush1.bf16.msra.mxu0 %v795
    %816 = vmatprep.subr.bf16.mxu0 0
    %817 = vmatpush1.bf16.msra.mxu0 %v794
    %818 = vmatprep.subr.bf16.mxu0 0
    %819 = vmatpush2.bf16.msra.mxu0 0
    %820 = vmatprep.subr.bf16.mxu0 0
    %821 = vmatpush2.bf16.msra.mxu0 0
    %822 = vmatprep.subr.bf16.mxu0 0
    %823 = vmatpush2.bf16.msra.mxu0 0
    %824 = vmatprep.subr.bf16.mxu0 0
    %825 = vmatpush2.bf16.msra.mxu0 0
    %826 = vmatprep.subr.bf16.mxu0 0
    %827 = vmatpush2.bf16.msra.mxu0 0
    %828 = vmatprep.subr.bf16.mxu0 0
    %829 = vmatpush2.bf16.msra.mxu0 0
    %830 = vmatprep.subr.bf16.mxu0 0
    %831 = vmatpush2.bf16.msra.mxu0 0
    %832 = vmatprep.subr.bf16.mxu0 0
    %833 = vmatpush2.bf16.msra.mxu0 0
    %834 = vmatprep.mubr.bf16.mxu0 0
    %835 = vmatmul.mubr.bf16.gmra.mxu0 %v576
    %v836 = vpop.f32.mrf.mxu0
    %v837 = vadd.f32 %v504, %v836
    %v838 = vpop.f32.mrf.mxu0
    %v839 = vpop.f32.mrf.mxu0
    %v840 = vadd.f32 %v505, %v839
    %v841 = vpop.f32.mrf.mxu0
    %842 = vmatprep.mubr.bf16.mxu0 0
    %843 = vmatmul.mubr.bf16.gmra.mxu0 %v577
    %v844 = vpop.f32.mrf.mxu0
    %v845 = vadd.f32 %v506, %v844
    %v846 = vpop.f32.mrf.mxu0
    %v847 = vpop.f32.mrf.mxu0
    %v848 = vadd.f32 %v507, %v847
    %v849 = vpop.f32.mrf.mxu0
    %850 = vmatprep.mubr.bf16.mxu0 0
    %851 = vmatmul.mubr.bf16.gmra.mxu0 %v578
    %v852 = vpop.f32.mrf.mxu0
    %v853 = vadd.f32 %v508, %v852
    %v854 = vpop.f32.mrf.mxu0
    %v855 = vpop.f32.mrf.mxu0
    %v856 = vadd.f32 %v509, %v855
    %v857 = vpop.f32.mrf.mxu0
    %858 = vmatprep.mubr.bf16.mxu0 0
    %859 = vmatmul.mubr.bf16.gmra.mxu0 %v579
    %v860 = vpop.f32.mrf.mxu0
    %v861 = vadd.f32 %v510, %v860
    %v862 = vpop.f32.mrf.mxu0
    %v863 = vpop.f32.mrf.mxu0
    %v864 = vadd.f32 %v511, %v863
    %v865 = vpop.f32.mrf.mxu0
    %866 = vmatprep.mubr.bf16.mxu0 0
    %867 = vmatmul.mubr.bf16.gmra.mxu0 %v580
    %v868 = vpop.f32.mrf.mxu0
    %v869 = vadd.f32 %v512, %v868
    %v870 = vpop.f32.mrf.mxu0
    %v871 = vpop.f32.mrf.mxu0
    %v872 = vadd.f32 %v513, %v871
    %v873 = vpop.f32.mrf.mxu0
    %874 = vmatprep.mubr.bf16.mxu0 0
    %875 = vmatmul.mubr.bf16.gmra.mxu0 %v581
    %v876 = vpop.f32.mrf.mxu0
    %v877 = vadd.f32 %v514, %v876
    %v878 = vpop.f32.mrf.mxu0
    %v879 = vpop.f32.mrf.mxu0
    %v880 = vadd.f32 %v515, %v879
    %v881 = vpop.f32.mrf.mxu0
    %882 = vmatprep.mubr.bf16.mxu0 0
    %883 = vmatmul.mubr.bf16.gmra.mxu0 %v582
    %v884 = vpop.f32.mrf.mxu0
    %v885 = vadd.f32 %v516, %v884
    %v886 = vpop.f32.mrf.mxu0
    %v887 = vpop.f32.mrf.mxu0
    %v888 = vadd.f32 %v517, %v887
    %v889 = vpop.f32.mrf.mxu0
    %890 = vmatprep.mubr.bf16.mxu0 0
    %891 = vmatmul.mubr.bf16.gmra.mxu0 %v583
    %v892 = vpop.f32.mrf.mxu0
    %v893 = vadd.f32 %v518, %v892
    %v894 = vpop.f32.mrf.mxu0
    %v895 = vpop.f32.mrf.mxu0
    %v896 = vadd.f32 %v519, %v895
    %v897 = vpop.f32.mrf.mxu0
    %898 = vdwg.mxu0
    %v899 = vpack.c.bf16 %v840, %v837
    %v900 = vpack.c.bf16 %v848, %v845
    %v901 = vpack.c.bf16 %v856, %v853
    %v902 = vpack.c.bf16 %v864, %v861
    %v903 = vpack.c.bf16 %v872, %v869
    %v904 = vpack.c.bf16 %v880, %v877
    %v905 = vpack.c.bf16 %v888, %v885
    %v906 = vpack.c.bf16 %v896, %v893
    %907 = vmatprep.subr.bf16.mxu0 0
    %908 = vmatpush1.bf16.msra.mxu0 %v906
    %909 = vmatprep.subr.bf16.mxu0 0
    %910 = vmatpush1.bf16.msra.mxu0 %v905
    %911 = vmatprep.subr.bf16.mxu0 0
    %912 = vmatpush1.bf16.msra.mxu0 %v904
    %913 = vmatprep.subr.bf16.mxu0 0
    %914 = vmatpush1.bf16.msra.mxu0 %v903
    %915 = vmatprep.subr.bf16.mxu0 0
    %916 = vmatpush1.bf16.msra.mxu0 %v902
    %917 = vmatprep.subr.bf16.mxu0 0
    %918 = vmatpush1.bf16.msra.mxu0 %v901
    %919 = vmatprep.subr.bf16.mxu0 0
    %920 = vmatpush1.bf16.msra.mxu0 %v900
    %921 = vmatprep.subr.bf16.mxu0 0
    %922 = vmatpush1.bf16.msra.mxu0 %v899
    %923 = vmatprep.subr.bf16.mxu0 0
    %924 = vmatpush2.bf16.msra.mxu0 0
    %925 = vmatprep.subr.bf16.mxu0 0
    %926 = vmatpush2.bf16.msra.mxu0 0
    %927 = vmatprep.subr.bf16.mxu0 0
    %928 = vmatpush2.bf16.msra.mxu0 0
    %929 = vmatprep.subr.bf16.mxu0 0
    %930 = vmatpush2.bf16.msra.mxu0 0
    %931 = vmatprep.subr.bf16.mxu0 0
    %932 = vmatpush2.bf16.msra.mxu0 0
    %933 = vmatprep.subr.bf16.mxu0 0
    %934 = vmatpush2.bf16.msra.mxu0 0
    %935 = vmatprep.subr.bf16.mxu0 0
    %936 = vmatpush2.bf16.msra.mxu0 0
    %937 = vmatprep.subr.bf16.mxu0 0
    %938 = vmatpush2.bf16.msra.mxu0 0
    %939 = vmatprep.mubr.bf16.mxu0 0
    %940 = vmatmul.mubr.bf16.gmra.mxu0 %v576
    %v941 = vpop.f32.mrf.mxu0
    %v942 = vadd.f32 %v504, %v941
    %v943 = vpop.f32.mrf.mxu0
    %v944 = vpop.f32.mrf.mxu0
    %v945 = vadd.f32 %v505, %v944
    %v946 = vpop.f32.mrf.mxu0
    %947 = vmatprep.mubr.bf16.mxu0 0
    %948 = vmatmul.mubr.bf16.gmra.mxu0 %v577
    %v949 = vpop.f32.mrf.mxu0
    %v950 = vadd.f32 %v506, %v949
    %v951 = vpop.f32.mrf.mxu0
    %v952 = vpop.f32.mrf.mxu0
    %v953 = vadd.f32 %v507, %v952
    %v954 = vpop.f32.mrf.mxu0
    %955 = vmatprep.mubr.bf16.mxu0 0
    %956 = vmatmul.mubr.bf16.gmra.mxu0 %v578
    %v957 = vpop.f32.mrf.mxu0
    %v958 = vadd.f32 %v508, %v957
    %v959 = vpop.f32.mrf.mxu0
    %v960 = vpop.f32.mrf.mxu0
    %v961 = vadd.f32 %v509, %v960
    %v962 = vpop.f32.mrf.mxu0
    %963 = vmatprep.mubr.bf16.mxu0 0
    %964 = vmatmul.mubr.bf16.gmra.mxu0 %v579
    %v965 = vpop.f32.mrf.mxu0
    %v966 = vadd.f32 %v510, %v965
    %v967 = vpop.f32.mrf.mxu0
    %v968 = vpop.f32.mrf.mxu0
    %v969 = vadd.f32 %v511, %v968
    %v970 = vpop.f32.mrf.mxu0
    %971 = vmatprep.mubr.bf16.mxu0 0
    %972 = vmatmul.mubr.bf16.gmra.mxu0 %v580
    %v973 = vpop.f32.mrf.mxu0
    %v974 = vadd.f32 %v512, %v973
    %v975 = vpop.f32.mrf.mxu0
    %v976 = vpop.f32.mrf.mxu0
    %v977 = vadd.f32 %v513, %v976
    %v978 = vpop.f32.mrf.mxu0
    %979 = vmatprep.mubr.bf16.mxu0 0
    %980 = vmatmul.mubr.bf16.gmra.mxu0 %v581
    %v981 = vpop.f32.mrf.mxu0
    %v982 = vadd.f32 %v514, %v981
    %v983 = vpop.f32.mrf.mxu0
    %v984 = vpop.f32.mrf.mxu0
    %v985 = vadd.f32 %v515, %v984
    %v986 = vpop.f32.mrf.mxu0
    %987 = vmatprep.mubr.bf16.mxu0 0
    %988 = vmatmul.mubr.bf16.gmra.mxu0 %v582
    %v989 = vpop.f32.mrf.mxu0
    %v990 = vadd.f32 %v516, %v989
    %v991 = vpop.f32.mrf.mxu0
    %v992 = vpop.f32.mrf.mxu0
    %v993 = vadd.f32 %v517, %v992
    %v994 = vpop.f32.mrf.mxu0
    %995 = vmatprep.mubr.bf16.mxu0 0
    %996 = vmatmul.mubr.bf16.gmra.mxu0 %v583
    %v997 = vpop.f32.mrf.mxu0
    %v998 = vadd.f32 %v518, %v997
    %v999 = vpop.f32.mrf.mxu0
    %v1000 = vpop.f32.mrf.mxu0
    %v1001 = vadd.f32 %v519, %v1000
    %v1002 = vpop.f32.mrf.mxu0
    %1003 = vdwg.mxu0
    %v1004 = vpack.c.bf16 %v945, %v942
    %v1005 = vpack.c.bf16 %v953, %v950
    %v1006 = vpack.c.bf16 %v961, %v958
    %v1007 = vpack.c.bf16 %v969, %v966
    %v1008 = vpack.c.bf16 %v977, %v974
    %v1009 = vpack.c.bf16 %v985, %v982
    %v1010 = vpack.c.bf16 %v993, %v990
    %v1011 = vpack.c.bf16 %v1001, %v998
    %1012 = vmatprep.subr.bf16.mxu0 0
    %1013 = vmatpush1.bf16.msra.mxu0 %v1011
    %1014 = vmatprep.subr.bf16.mxu0 0
    %1015 = vmatpush1.bf16.msra.mxu0 %v1010
    %1016 = vmatprep.subr.bf16.mxu0 0
    %1017 = vmatpush1.bf16.msra.mxu0 %v1009
    %1018 = vmatprep.subr.bf16.mxu0 0
    %1019 = vmatpush1.bf16.msra.mxu0 %v1008
    %1020 = vmatprep.subr.bf16.mxu0 0
    %1021 = vmatpush1.bf16.msra.mxu0 %v1007
    %1022 = vmatprep.subr.bf16.mxu0 0
    %1023 = vmatpush1.bf16.msra.mxu0 %v1006
    %1024 = vmatprep.subr.bf16.mxu0 0
    %1025 = vmatpush1.bf16.msra.mxu0 %v1005
    %1026 = vmatprep.subr.bf16.mxu0 0
    %1027 = vmatpush1.bf16.msra.mxu0 %v1004
    %1028 = vmatprep.subr.bf16.mxu0 0
    %1029 = vmatpush2.bf16.msra.mxu0 0
    %1030 = vmatprep.subr.bf16.mxu0 0
    %1031 = vmatpush2.bf16.msra.mxu0 0
    %1032 = vmatprep.subr.bf16.mxu0 0
    %1033 = vmatpush2.bf16.msra.mxu0 0
    %1034 = vmatprep.subr.bf16.mxu0 0
    %1035 = vmatpush2.bf16.msra.mxu0 0
    %1036 = vmatprep.subr.bf16.mxu0 0
    %1037 = vmatpush2.bf16.msra.mxu0 0
    %1038 = vmatprep.subr.bf16.mxu0 0
    %1039 = vmatpush2.bf16.msra.mxu0 0
    %1040 = vmatprep.subr.bf16.mxu0 0
    %1041 = vmatpush2.bf16.msra.mxu0 0
    %1042 = vmatprep.subr.bf16.mxu0 0
    %1043 = vmatpush2.bf16.msra.mxu0 0
    %1044 = vmatprep.mubr.bf16.mxu0 0
    %1045 = vmatmul.mubr.bf16.gmra.mxu0 %v576
    %v1046 = vpop.f32.mrf.mxu0
    %v1047 = vadd.f32 %v504, %v1046
    %v1048 = vpop.f32.mrf.mxu0
    %v1049 = vpop.f32.mrf.mxu0
    %v1050 = vadd.f32 %v505, %v1049
    %v1051 = vpop.f32.mrf.mxu0
    %1052 = vmatprep.mubr.bf16.mxu0 0
    %1053 = vmatmul.mubr.bf16.gmra.mxu0 %v577
    %v1054 = vpop.f32.mrf.mxu0
    %v1055 = vadd.f32 %v506, %v1054
    %v1056 = vpop.f32.mrf.mxu0
    %v1057 = vpop.f32.mrf.mxu0
    %v1058 = vadd.f32 %v507, %v1057
    %v1059 = vpop.f32.mrf.mxu0
    %1060 = vmatprep.mubr.bf16.mxu0 0
    %1061 = vmatmul.mubr.bf16.gmra.mxu0 %v578
    %v1062 = vpop.f32.mrf.mxu0
    %v1063 = vadd.f32 %v508, %v1062
    %v1064 = vpop.f32.mrf.mxu0
    %v1065 = vpop.f32.mrf.mxu0
    %v1066 = vadd.f32 %v509, %v1065
    %v1067 = vpop.f32.mrf.mxu0
    %1068 = vmatprep.mubr.bf16.mxu0 0
    %1069 = vmatmul.mubr.bf16.gmra.mxu0 %v579
    %v1070 = vpop.f32.mrf.mxu0
    %v1071 = vadd.f32 %v510, %v1070
    %v1072 = vpop.f32.mrf.mxu0
    %v1073 = vpop.f32.mrf.mxu0
    %v1074 = vadd.f32 %v511, %v1073
    %v1075 = vpop.f32.mrf.mxu0
    %1076 = vmatprep.mubr.bf16.mxu0 0
    %1077 = vmatmul.mubr.bf16.gmra.mxu0 %v580
    %v1078 = vpop.f32.mrf.mxu0
    %v1079 = vadd.f32 %v512, %v1078
    %v1080 = vpop.f32.mrf.mxu0
    %v1081 = vpop.f32.mrf.mxu0
    %v1082 = vadd.f32 %v513, %v1081
    %v1083 = vpop.f32.mrf.mxu0
    %1084 = vmatprep.mubr.bf16.mxu0 0
    %1085 = vmatmul.mubr.bf16.gmra.mxu0 %v581
    %v1086 = vpop.f32.mrf.mxu0
    %v1087 = vadd.f32 %v514, %v1086
    %v1088 = vpop.f32.mrf.mxu0
    %v1089 = vpop.f32.mrf.mxu0
    %v1090 = vadd.f32 %v515, %v1089
    %v1091 = vpop.f32.mrf.mxu0
    %1092 = vmatprep.mubr.bf16.mxu0 0
    %1093 = vmatmul.mubr.bf16.gmra.mxu0 %v582
    %v1094 = vpop.f32.mrf.mxu0
    %v1095 = vadd.f32 %v516, %v1094
    %v1096 = vpop.f32.mrf.mxu0
    %v1097 = vpop.f32.mrf.mxu0
    %v1098 = vadd.f32 %v517, %v1097
    %v1099 = vpop.f32.mrf.mxu0
    %1100 = vmatprep.mubr.bf16.mxu0 0
    %1101 = vmatmul.mubr.bf16.gmra.mxu0 %v583
    %v1102 = vpop.f32.mrf.mxu0
    %v1103 = vadd.f32 %v518, %v1102
    %v1104 = vpop.f32.mrf.mxu0
    %v1105 = vpop.f32.mrf.mxu0
    %v1106 = vadd.f32 %v519, %v1105
    %v1107 = vpop.f32.mrf.mxu0
    %1108 = vdwg.mxu0
    %v1109 = vpack.c.bf16 %v1050, %v1047
    %v1110 = vpack.c.bf16 %v1058, %v1055
    %v1111 = vpack.c.bf16 %v1066, %v1063
    %v1112 = vpack.c.bf16 %v1074, %v1071
    %v1113 = vpack.c.bf16 %v1082, %v1079
    %v1114 = vpack.c.bf16 %v1090, %v1087
    %v1115 = vpack.c.bf16 %v1098, %v1095
    %v1116 = vpack.c.bf16 %v1106, %v1103
    %1117 = vmatprep.subr.bf16.mxu0 0
    %1118 = vmatpush1.bf16.msra.mxu0 %v1116
    %1119 = vmatprep.subr.bf16.mxu0 0
    %1120 = vmatpush1.bf16.msra.mxu0 %v1115
    %1121 = vmatprep.subr.bf16.mxu0 0
    %1122 = vmatpush1.bf16.msra.mxu0 %v1114
    %1123 = vmatprep.subr.bf16.mxu0 0
    %1124 = vmatpush1.bf16.msra.mxu0 %v1113
    %1125 = vmatprep.subr.bf16.mxu0 0
    %1126 = vmatpush1.bf16.msra.mxu0 %v1112
    %1127 = vmatprep.subr.bf16.mxu0 0
    %1128 = vmatpush1.bf16.msra.mxu0 %v1111
    %1129 = vmatprep.subr.bf16.mxu0 0
    %1130 = vmatpush1.bf16.msra.mxu0 %v1110
    %1131 = vmatprep.subr.bf16.mxu0 0
    %1132 = vmatpush1.bf16.msra.mxu0 %v1109
    %1133 = vmatprep.subr.bf16.mxu0 0
    %1134 = vmatpush2.bf16.msra.mxu0 0
    %1135 = vmatprep.subr.bf16.mxu0 0
    %1136 = vmatpush2.bf16.msra.mxu0 0
    %1137 = vmatprep.subr.bf16.mxu0 0
    %1138 = vmatpush2.bf16.msra.mxu0 0
    %1139 = vmatprep.subr.bf16.mxu0 0
    %1140 = vmatpush2.bf16.msra.mxu0 0
    %1141 = vmatprep.subr.bf16.mxu0 0
    %1142 = vmatpush2.bf16.msra.mxu0 0
    %1143 = vmatprep.subr.bf16.mxu0 0
    %1144 = vmatpush2.bf16.msra.mxu0 0
    %1145 = vmatprep.subr.bf16.mxu0 0
    %1146 = vmatpush2.bf16.msra.mxu0 0
    %1147 = vmatprep.subr.bf16.mxu0 0
    %1148 = vmatpush2.bf16.msra.mxu0 0
    %1149 = vmatprep.mubr.bf16.mxu0 0
    %1150 = vmatmul.mubr.bf16.gmra.mxu0 %v576
    %v1151 = vpop.f32.mrf.mxu0
    %v1152 = vadd.f32 %v504, %v1151
    %v1153 = vpop.f32.mrf.mxu0
    %v1154 = vpop.f32.mrf.mxu0
    %v1155 = vadd.f32 %v505, %v1154
    %v1156 = vpop.f32.mrf.mxu0
    %1157 = vmatprep.mubr.bf16.mxu0 0
    %1158 = vmatmul.mubr.bf16.gmra.mxu0 %v577
    %v1159 = vpop.f32.mrf.mxu0
    %v1160 = vadd.f32 %v506, %v1159
    %v1161 = vpop.f32.mrf.mxu0
    %v1162 = vpop.f32.mrf.mxu0
    %v1163 = vadd.f32 %v507, %v1162
    %v1164 = vpop.f32.mrf.mxu0
    %1165 = vmatprep.mubr.bf16.mxu0 0
    %1166 = vmatmul.mubr.bf16.gmra.mxu0 %v578
    %v1167 = vpop.f32.mrf.mxu0
    %v1168 = vadd.f32 %v508, %v1167
    %v1169 = vpop.f32.mrf.mxu0
    %v1170 = vpop.f32.mrf.mxu0
    %v1171 = vadd.f32 %v509, %v1170
    %v1172 = vpop.f32.mrf.mxu0
    %1173 = vmatprep.mubr.bf16.mxu0 0
    %1174 = vmatmul.mubr.bf16.gmra.mxu0 %v579
    %v1175 = vpop.f32.mrf.mxu0
    %v1176 = vadd.f32 %v510, %v1175
    %v1177 = vpop.f32.mrf.mxu0
    %v1178 = vpop.f32.mrf.mxu0
    %v1179 = vadd.f32 %v511, %v1178
    %v1180 = vpop.f32.mrf.mxu0
    %1181 = vmatprep.mubr.bf16.mxu0 0
    %1182 = vmatmul.mubr.bf16.gmra.mxu0 %v580
    %v1183 = vpop.f32.mrf.mxu0
    %v1184 = vadd.f32 %v512, %v1183
    %v1185 = vpop.f32.mrf.mxu0
    %v1186 = vpop.f32.mrf.mxu0
    %v1187 = vadd.f32 %v513, %v1186
    %v1188 = vpop.f32.mrf.mxu0
    %1189 = vmatprep.mubr.bf16.mxu0 0
    %1190 = vmatmul.mubr.bf16.gmra.mxu0 %v581
    %v1191 = vpop.f32.mrf.mxu0
    %v1192 = vadd.f32 %v514, %v1191
    %v1193 = vpop.f32.mrf.mxu0
    %v1194 = vpop.f32.mrf.mxu0
    %v1195 = vadd.f32 %v515, %v1194
    %v1196 = vpop.f32.mrf.mxu0
    %1197 = vmatprep.mubr.bf16.mxu0 0
    %1198 = vmatmul.mubr.bf16.gmra.mxu0 %v582
    %v1199 = vpop.f32.mrf.mxu0
    %v1200 = vadd.f32 %v516, %v1199
    %v1201 = vpop.f32.mrf.mxu0
    %v1202 = vpop.f32.mrf.mxu0
    %v1203 = vadd.f32 %v517, %v1202
    %v1204 = vpop.f32.mrf.mxu0
    %1205 = vmatprep.mubr.bf16.mxu0 0
    %1206 = vmatmul.mubr.bf16.gmra.mxu0 %v583
    %v1207 = vpop.f32.mrf.mxu0
    %v1208 = vadd.f32 %v518, %v1207
    %v1209 = vpop.f32.mrf.mxu0
    %v1210 = vpop.f32.mrf.mxu0
    %v1211 = vadd.f32 %v519, %v1210
    %v1212 = vpop.f32.mrf.mxu0
    %1213 = vdwg.mxu0
    %v1214 = vpack.c.bf16 %v1155, %v1152
    %v1215 = vpack.c.bf16 %v1163, %v1160
    %v1216 = vpack.c.bf16 %v1171, %v1168
    %v1217 = vpack.c.bf16 %v1179, %v1176
    %v1218 = vpack.c.bf16 %v1187, %v1184
    %v1219 = vpack.c.bf16 %v1195, %v1192
    %v1220 = vpack.c.bf16 %v1203, %v1200
    %v1221 = vpack.c.bf16 %v1211, %v1208
    %1222 = vmatprep.subr.bf16.mxu0 0
    %1223 = vmatpush1.bf16.msra.mxu0 %v1221
    %1224 = vmatprep.subr.bf16.mxu0 0
    %1225 = vmatpush1.bf16.msra.mxu0 %v1220
    %1226 = vmatprep.subr.bf16.mxu0 0
    %1227 = vmatpush1.bf16.msra.mxu0 %v1219
    %1228 = vmatprep.subr.bf16.mxu0 0
    %1229 = vmatpush1.bf16.msra.mxu0 %v1218
    %1230 = vmatprep.subr.bf16.mxu0 0
    %1231 = vmatpush1.bf16.msra.mxu0 %v1217
    %1232 = vmatprep.subr.bf16.mxu0 0
    %1233 = vmatpush1.bf16.msra.mxu0 %v1216
    %1234 = vmatprep.subr.bf16.mxu0 0
    %1235 = vmatpush1.bf16.msra.mxu0 %v1215
    %1236 = vmatprep.subr.bf16.mxu0 0
    %1237 = vmatpush1.bf16.msra.mxu0 %v1214
    %1238 = vmatprep.subr.bf16.mxu0 0
    %1239 = vmatpush2.bf16.msra.mxu0 0
    %1240 = vmatprep.subr.bf16.mxu0 0
    %1241 = vmatpush2.bf16.msra.mxu0 0
    %1242 = vmatprep.subr.bf16.mxu0 0
    %1243 = vmatpush2.bf16.msra.mxu0 0
    %1244 = vmatprep.subr.bf16.mxu0 0
    %1245 = vmatpush2.bf16.msra.mxu0 0
    %1246 = vmatprep.subr.bf16.mxu0 0
    %1247 = vmatpush2.bf16.msra.mxu0 0
    %1248 = vmatprep.subr.bf16.mxu0 0
    %1249 = vmatpush2.bf16.msra.mxu0 0
    %1250 = vmatprep.subr.bf16.mxu0 0
    %1251 = vmatpush2.bf16.msra.mxu0 0
    %1252 = vmatprep.subr.bf16.mxu0 0
    %1253 = vmatpush2.bf16.msra.mxu0 0
    %1254 = vmatprep.mubr.bf16.mxu0 0
    %1255 = vmatmul.mubr.bf16.gmra.mxu0 %v576
    %v1256 = vpop.f32.mrf.mxu0
    %v1257 = vadd.f32 %v504, %v1256
    %v1258 = vpop.f32.mrf.mxu0
    %v1259 = vpop.f32.mrf.mxu0
    %v1260 = vadd.f32 %v505, %v1259
    %v1261 = vpop.f32.mrf.mxu0
    %1262 = vmatprep.mubr.bf16.mxu0 0
    %1263 = vmatmul.mubr.bf16.gmra.mxu0 %v577
    %v1264 = vpop.f32.mrf.mxu0
    %v1265 = vadd.f32 %v506, %v1264
    %v1266 = vpop.f32.mrf.mxu0
    %v1267 = vpop.f32.mrf.mxu0
    %v1268 = vadd.f32 %v507, %v1267
    %v1269 = vpop.f32.mrf.mxu0
    %1270 = vmatprep.mubr.bf16.mxu0 0
    %1271 = vmatmul.mubr.bf16.gmra.mxu0 %v578
    %v1272 = vpop.f32.mrf.mxu0
    %v1273 = vadd.f32 %v508, %v1272
    %v1274 = vpop.f32.mrf.mxu0
    %v1275 = vpop.f32.mrf.mxu0
    %v1276 = vadd.f32 %v509, %v1275
    %v1277 = vpop.f32.mrf.mxu0
    %1278 = vmatprep.mubr.bf16.mxu0 0
    %1279 = vmatmul.mubr.bf16.gmra.mxu0 %v579
    %v1280 = vpop.f32.mrf.mxu0
    %v1281 = vadd.f32 %v510, %v1280
    %v1282 = vpop.f32.mrf.mxu0
    %v1283 = vpop.f32.mrf.mxu0
    %v1284 = vadd.f32 %v511, %v1283
    %v1285 = vpop.f32.mrf.mxu0
    %1286 = vmatprep.mubr.bf16.mxu0 0
    %1287 = vmatmul.mubr.bf16.gmra.mxu0 %v580
    %v1288 = vpop.f32.mrf.mxu0
    %v1289 = vadd.f32 %v512, %v1288
    %v1290 = vpop.f32.mrf.mxu0
    %v1291 = vpop.f32.mrf.mxu0
    %v1292 = vadd.f32 %v513, %v1291
    %v1293 = vpop.f32.mrf.mxu0
    %1294 = vmatprep.mubr.bf16.mxu0 0
    %1295 = vmatmul.mubr.bf16.gmra.mxu0 %v581
    %v1296 = vpop.f32.mrf.mxu0
    %v1297 = vadd.f32 %v514, %v1296
    %v1298 = vpop.f32.mrf.mxu0
    %v1299 = vpop.f32.mrf.mxu0
    %v1300 = vadd.f32 %v515, %v1299
    %v1301 = vpop.f32.mrf.mxu0
    %1302 = vmatprep.mubr.bf16.mxu0 0
    %1303 = vmatmul.mubr.bf16.gmra.mxu0 %v582
    %v1304 = vpop.f32.mrf.mxu0
    %v1305 = vadd.f32 %v516, %v1304
    %v1306 = vpop.f32.mrf.mxu0
    %v1307 = vpop.f32.mrf.mxu0
    %v1308 = vadd.f32 %v517, %v1307
    %v1309 = vpop.f32.mrf.mxu0
    %1310 = vmatprep.mubr.bf16.mxu0 0
    %1311 = vmatmul.mubr.bf16.gmra.mxu0 %v583
    %v1312 = vpop.f32.mrf.mxu0
    %v1313 = vadd.f32 %v518, %v1312
    %v1314 = vpop.f32.mrf.mxu0
    %v1315 = vpop.f32.mrf.mxu0
    %v1316 = vadd.f32 %v519, %v1315
    %v1317 = vpop.f32.mrf.mxu0
    %1318 = vdwg.mxu0
    %v1319 = vpack.c.bf16 %v1260, %v1257
    %v1320 = vpack.c.bf16 %v1268, %v1265
    %v1321 = vpack.c.bf16 %v1276, %v1273
    %v1322 = vpack.c.bf16 %v1284, %v1281
    %v1323 = vpack.c.bf16 %v1292, %v1289
    %v1324 = vpack.c.bf16 %v1300, %v1297
    %v1325 = vpack.c.bf16 %v1308, %v1305
    %v1326 = vpack.c.bf16 %v1316, %v1313
    %1327 = vmatprep.subr.bf16.mxu0 0
    %1328 = vmatpush1.bf16.msra.mxu0 %v1326
    %1329 = vmatprep.subr.bf16.mxu0 0
    %1330 = vmatpush1.bf16.msra.mxu0 %v1325
    %1331 = vmatprep.subr.bf16.mxu0 0
    %1332 = vmatpush1.bf16.msra.mxu0 %v1324
    %1333 = vmatprep.subr.bf16.mxu0 0
    %1334 = vmatpush1.bf16.msra.mxu0 %v1323
    %1335 = vmatprep.subr.bf16.mxu0 0
    %1336 = vmatpush1.bf16.msra.mxu0 %v1322
    %1337 = vmatprep.subr.bf16.mxu0 0
    %1338 = vmatpush1.bf16.msra.mxu0 %v1321
    %1339 = vmatprep.subr.bf16.mxu0 0
    %1340 = vmatpush1.bf16.msra.mxu0 %v1320
    %1341 = vmatprep.subr.bf16.mxu0 0
    %1342 = vmatpush1.bf16.msra.mxu0 %v1319
    %1343 = vmatprep.subr.bf16.mxu0 0
    %1344 = vmatpush2.bf16.msra.mxu0 0
    %1345 = vmatprep.subr.bf16.mxu0 0
    %1346 = vmatpush2.bf16.msra.mxu0 0
    %1347 = vmatprep.subr.bf16.mxu0 0
    %1348 = vmatpush2.bf16.msra.mxu0 0
    %1349 = vmatprep.subr.bf16.mxu0 0
    %1350 = vmatpush2.bf16.msra.mxu0 0
    %1351 = vmatprep.subr.bf16.mxu0 0
    %1352 = vmatpush2.bf16.msra.mxu0 0
    %1353 = vmatprep.subr.bf16.mxu0 0
    %1354 = vmatpush2.bf16.msra.mxu0 0
    %1355 = vmatprep.subr.bf16.mxu0 0
    %1356 = vmatpush2.bf16.msra.mxu0 0
    %1357 = vmatprep.subr.bf16.mxu0 0
    %1358 = vmatpush2.bf16.msra.mxu0 0
    %1359 = vmatprep.mubr.bf16.mxu0 0
    %1360 = vmatmul.mubr.bf16.gmra.mxu0 %v576
    %v1361 = vpop.f32.mrf.mxu0
    %v1362 = vadd.f32 %v504, %v1361
    %v1363 = vpop.f32.mrf.mxu0
    %v1364 = vpop.f32.mrf.mxu0
    %v1365 = vadd.f32 %v505, %v1364
    %v1366 = vpop.f32.mrf.mxu0
    %1367 = vmatprep.mubr.bf16.mxu0 0
    %1368 = vmatmul.mubr.bf16.gmra.mxu0 %v577
    %v1369 = vpop.f32.mrf.mxu0
    %v1370 = vadd.f32 %v506, %v1369
    %v1371 = vpop.f32.mrf.mxu0
    %v1372 = vpop.f32.mrf.mxu0
    %v1373 = vadd.f32 %v507, %v1372
    %v1374 = vpop.f32.mrf.mxu0
    %1375 = vmatprep.mubr.bf16.mxu0 0
    %1376 = vmatmul.mubr.bf16.gmra.mxu0 %v578
    %v1377 = vpop.f32.mrf.mxu0
    %v1378 = vadd.f32 %v508, %v1377
    %v1379 = vpop.f32.mrf.mxu0
    %v1380 = vpop.f32.mrf.mxu0
    %v1381 = vadd.f32 %v509, %v1380
    %v1382 = vpop.f32.mrf.mxu0
    %1383 = vmatprep.mubr.bf16.mxu0 0
    %1384 = vmatmul.mubr.bf16.gmra.mxu0 %v579
    %v1385 = vpop.f32.mrf.mxu0
    %v1386 = vadd.f32 %v510, %v1385
    %v1387 = vpop.f32.mrf.mxu0
    %v1388 = vpop.f32.mrf.mxu0
    %v1389 = vadd.f32 %v511, %v1388
    %v1390 = vpop.f32.mrf.mxu0
    %1391 = vmatprep.mubr.bf16.mxu0 0
    %1392 = vmatmul.mubr.bf16.gmra.mxu0 %v580
    %v1393 = vpop.f32.mrf.mxu0
    %v1394 = vadd.f32 %v512, %v1393
    %v1395 = vpop.f32.mrf.mxu0
    %v1396 = vpop.f32.mrf.mxu0
    %v1397 = vadd.f32 %v513, %v1396
    %v1398 = vpop.f32.mrf.mxu0
    %1399 = vmatprep.mubr.bf16.mxu0 0
    %1400 = vmatmul.mubr.bf16.gmra.mxu0 %v581
    %v1401 = vpop.f32.mrf.mxu0
    %v1402 = vadd.f32 %v514, %v1401
    %v1403 = vpop.f32.mrf.mxu0
    %v1404 = vpop.f32.mrf.mxu0
    %v1405 = vadd.f32 %v515, %v1404
    %v1406 = vpop.f32.mrf.mxu0
    %1407 = vmatprep.mubr.bf16.mxu0 0
    %1408 = vmatmul.mubr.bf16.gmra.mxu0 %v582
    %v1409 = vpop.f32.mrf.mxu0
    %v1410 = vadd.f32 %v516, %v1409
    %v1411 = vpop.f32.mrf.mxu0
    %v1412 = vpop.f32.mrf.mxu0
    %v1413 = vadd.f32 %v517, %v1412
    %v1414 = vpop.f32.mrf.mxu0
    %1415 = vmatprep.mubr.bf16.mxu0 0
    %1416 = vmatmul.mubr.bf16.gmra.mxu0 %v583
    %v1417 = vpop.f32.mrf.mxu0
    %v1418 = vadd.f32 %v518, %v1417
    %v1419 = vpop.f32.mrf.mxu0
    %v1420 = vpop.f32.mrf.mxu0
    %v1421 = vadd.f32 %v519, %v1420
    %v1422 = vpop.f32.mrf.mxu0
    %1423 = vdwg.mxu0
    %v1424 = vpack.c.bf16 %v1365, %v1362
    %v1425 = vpack.c.bf16 %v1373, %v1370
    %v1426 = vpack.c.bf16 %v1381, %v1378
    %v1427 = vpack.c.bf16 %v1389, %v1386
    %v1428 = vpack.c.bf16 %v1397, %v1394
    %v1429 = vpack.c.bf16 %v1405, %v1402
    %v1430 = vpack.c.bf16 %v1413, %v1410
    %v1431 = vpack.c.bf16 %v1421, %v1418
    %1432 = vmatprep.subr.bf16.mxu0 0
    %1433 = vmatpush1.bf16.msra.mxu0 %v1431
    %1434 = vmatprep.subr.bf16.mxu0 0
    %1435 = vmatpush1.bf16.msra.mxu0 %v1430
    %1436 = vmatprep.subr.bf16.mxu0 0
    %1437 = vmatpush1.bf16.msra.mxu0 %v1429
    %1438 = vmatprep.subr.bf16.mxu0 0
    %1439 = vmatpush1.bf16.msra.mxu0 %v1428
    %1440 = vmatprep.subr.bf16.mxu0 0
    %1441 = vmatpush1.bf16.msra.mxu0 %v1427
    %1442 = vmatprep.subr.bf16.mxu0 0
    %1443 = vmatpush1.bf16.msra.mxu0 %v1426
    %1444 = vmatprep.subr.bf16.mxu0 0
    %1445 = vmatpush1.bf16.msra.mxu0 %v1425
    %1446 = vmatprep.subr.bf16.mxu0 0
    %1447 = vmatpush1.bf16.msra.mxu0 %v1424
    %1448 = vmatprep.subr.bf16.mxu0 0
    %1449 = vmatpush2.bf16.msra.mxu0 0
    %1450 = vmatprep.subr.bf16.mxu0 0
    %1451 = vmatpush2.bf16.msra.mxu0 0
    %1452 = vmatprep.subr.bf16.mxu0 0
    %1453 = vmatpush2.bf16.msra.mxu0 0
    %1454 = vmatprep.subr.bf16.mxu0 0
    %1455 = vmatpush2.bf16.msra.mxu0 0
    %1456 = vmatprep.subr.bf16.mxu0 0
    %1457 = vmatpush2.bf16.msra.mxu0 0
    %1458 = vmatprep.subr.bf16.mxu0 0
    %1459 = vmatpush2.bf16.msra.mxu0 0
    %1460 = vmatprep.subr.bf16.mxu0 0
    %1461 = vmatpush2.bf16.msra.mxu0 0
    %1462 = vmatprep.subr.bf16.mxu0 0
    %1463 = vmatpush2.bf16.msra.mxu0 0
    %1464 = vmatprep.mubr.bf16.mxu0 0
    %1465 = vmatmul.mubr.bf16.gmra.mxu0 %v576
    %v1466 = vpop.f32.mrf.mxu0
    %v1467 = vadd.f32 %v504, %v1466
    %v1468 = vpop.f32.mrf.mxu0
    %v1469 = vpop.f32.mrf.mxu0
    %v1470 = vadd.f32 %v505, %v1469
    %v1471 = vpop.f32.mrf.mxu0
    %1472 = vmatprep.mubr.bf16.mxu0 0
    %1473 = vmatmul.mubr.bf16.gmra.mxu0 %v577
    %v1474 = vpop.f32.mrf.mxu0
    %v1475 = vadd.f32 %v506, %v1474
    %v1476 = vpop.f32.mrf.mxu0
    %v1477 = vpop.f32.mrf.mxu0
    %v1478 = vadd.f32 %v507, %v1477
    %v1479 = vpop.f32.mrf.mxu0
    %1480 = vmatprep.mubr.bf16.mxu0 0
    %1481 = vmatmul.mubr.bf16.gmra.mxu0 %v578
    %v1482 = vpop.f32.mrf.mxu0
    %v1483 = vadd.f32 %v508, %v1482
    %v1484 = vpop.f32.mrf.mxu0
    %v1485 = vpop.f32.mrf.mxu0
    %v1486 = vadd.f32 %v509, %v1485
    %v1487 = vpop.f32.mrf.mxu0
    %1488 = vmatprep.mubr.bf16.mxu0 0
    %1489 = vmatmul.mubr.bf16.gmra.mxu0 %v579
    %v1490 = vpop.f32.mrf.mxu0
    %v1491 = vadd.f32 %v510, %v1490
    %v1492 = vpop.f32.mrf.mxu0
    %v1493 = vpop.f32.mrf.mxu0
    %v1494 = vadd.f32 %v511, %v1493
    %v1495 = vpop.f32.mrf.mxu0
    %1496 = vmatprep.mubr.bf16.mxu0 0
    %1497 = vmatmul.mubr.bf16.gmra.mxu0 %v580
    %v1498 = vpop.f32.mrf.mxu0
    %v1499 = vadd.f32 %v512, %v1498
    %v1500 = vpop.f32.mrf.mxu0
    %v1501 = vpop.f32.mrf.mxu0
    %v1502 = vadd.f32 %v513, %v1501
    %v1503 = vpop.f32.mrf.mxu0
    %1504 = vmatprep.mubr.bf16.mxu0 0
    %1505 = vmatmul.mubr.bf16.gmra.mxu0 %v581
    %v1506 = vpop.f32.mrf.mxu0
    %v1507 = vadd.f32 %v514, %v1506
    %v1508 = vpop.f32.mrf.mxu0
    %v1509 = vpop.f32.mrf.mxu0
    %v1510 = vadd.f32 %v515, %v1509
    %v1511 = vpop.f32.mrf.mxu0
    %1512 = vmatprep.mubr.bf16.mxu0 0
    %1513 = vmatmul.mubr.bf16.gmra.mxu0 %v582
    %v1514 = vpop.f32.mrf.mxu0
    %v1515 = vadd.f32 %v516, %v1514
    %v1516 = vpop.f32.mrf.mxu0
    %v1517 = vpop.f32.mrf.mxu0
    %v1518 = vadd.f32 %v517, %v1517
    %v1519 = vpop.f32.mrf.mxu0
    %1520 = vmatprep.mubr.bf16.mxu0 0
    %1521 = vmatmul.mubr.bf16.gmra.mxu0 %v583
    %v1522 = vpop.f32.mrf.mxu0
    %v1523 = vadd.f32 %v518, %v1522
    %v1524 = vpop.f32.mrf.mxu0
    %v1525 = vpop.f32.mrf.mxu0
    %v1526 = vadd.f32 %v519, %v1525
    %v1527 = vpop.f32.mrf.mxu0
    %1528 = vdwg.mxu0
    %v1529 = vpack.c.bf16 %v1470, %v1467
    %v1530 = vpack.c.bf16 %v1478, %v1475
    %v1531 = vpack.c.bf16 %v1486, %v1483
    %v1532 = vpack.c.bf16 %v1494, %v1491
    %v1533 = vpack.c.bf16 %v1502, %v1499
    %v1534 = vpack.c.bf16 %v1510, %v1507
    %v1535 = vpack.c.bf16 %v1518, %v1515
    %v1536 = vpack.c.bf16 %v1526, %v1523
    %1537 = vmatprep.subr.bf16.mxu0 0
    %1538 = vmatpush1.bf16.msra.mxu0 %v1536
    %1539 = vmatprep.subr.bf16.mxu0 0
    %1540 = vmatpush1.bf16.msra.mxu0 %v1535
    %1541 = vmatprep.subr.bf16.mxu0 0
    %1542 = vmatpush1.bf16.msra.mxu0 %v1534
    %1543 = vmatprep.subr.bf16.mxu0 0
    %1544 = vmatpush1.bf16.msra.mxu0 %v1533
    %1545 = vmatprep.subr.bf16.mxu0 0
    %1546 = vmatpush1.bf16.msra.mxu0 %v1532
    %1547 = vmatprep.subr.bf16.mxu0 0
    %1548 = vmatpush1.bf16.msra.mxu0 %v1531
    %1549 = vmatprep.subr.bf16.mxu0 0
    %1550 = vmatpush1.bf16.msra.mxu0 %v1530
    %1551 = vmatprep.subr.bf16.mxu0 0
    %1552 = vmatpush1.bf16.msra.mxu0 %v1529
    %1553 = vmatprep.subr.bf16.mxu0 0
    %1554 = vmatpush2.bf16.msra.mxu0 0
    %1555 = vmatprep.subr.bf16.mxu0 0
    %1556 = vmatpush2.bf16.msra.mxu0 0
    %1557 = vmatprep.subr.bf16.mxu0 0
    %1558 = vmatpush2.bf16.msra.mxu0 0
    %1559 = vmatprep.subr.bf16.mxu0 0
    %1560 = vmatpush2.bf16.msra.mxu0 0
    %1561 = vmatprep.subr.bf16.mxu0 0
    %1562 = vmatpush2.bf16.msra.mxu0 0
    %1563 = vmatprep.subr.bf16.mxu0 0
    %1564 = vmatpush2.bf16.msra.mxu0 0
    %1565 = vmatprep.subr.bf16.mxu0 0
    %1566 = vmatpush2.bf16.msra.mxu0 0
    %1567 = vmatprep.subr.bf16.mxu0 0
    %1568 = vmatpush2.bf16.msra.mxu0 0
    %1569 = vmatprep.mubr.bf16.mxu0 0
    %1570 = vmatmul.mubr.bf16.gmra.mxu0 %v576
    %v1571 = vpop.f32.mrf.mxu0
    %v1572 = vadd.f32 %v504, %v1571
    %v1573 = vpop.f32.mrf.mxu0
    %v1574 = vpop.f32.mrf.mxu0
    %v1575 = vadd.f32 %v505, %v1574
    %v1576 = vpop.f32.mrf.mxu0
    %1577 = vmatprep.mubr.bf16.mxu0 0
    %1578 = vmatmul.mubr.bf16.gmra.mxu0 %v577
    %v1579 = vpop.f32.mrf.mxu0
    %v1580 = vadd.f32 %v506, %v1579
    %v1581 = vpop.f32.mrf.mxu0
    %v1582 = vpop.f32.mrf.mxu0
    %v1583 = vadd.f32 %v507, %v1582
    %v1584 = vpop.f32.mrf.mxu0
    %1585 = vmatprep.mubr.bf16.mxu0 0
    %1586 = vmatmul.mubr.bf16.gmra.mxu0 %v578
    %v1587 = vpop.f32.mrf.mxu0
    %v1588 = vadd.f32 %v508, %v1587
    %v1589 = vpop.f32.mrf.mxu0
    %v1590 = vpop.f32.mrf.mxu0
    %v1591 = vadd.f32 %v509, %v1590
    %v1592 = vpop.f32.mrf.mxu0
    %1593 = vmatprep.mubr.bf16.mxu0 0
    %1594 = vmatmul.mubr.bf16.gmra.mxu0 %v579
    %v1595 = vpop.f32.mrf.mxu0
    %v1596 = vadd.f32 %v510, %v1595
    %v1597 = vpop.f32.mrf.mxu0
    %v1598 = vpop.f32.mrf.mxu0
    %v1599 = vadd.f32 %v511, %v1598
    %v1600 = vpop.f32.mrf.mxu0
    %1601 = vmatprep.mubr.bf16.mxu0 0
    %1602 = vmatmul.mubr.bf16.gmra.mxu0 %v580
    %v1603 = vpop.f32.mrf.mxu0
    %v1604 = vadd.f32 %v512, %v1603
    %v1605 = vpop.f32.mrf.mxu0
    %v1606 = vpop.f32.mrf.mxu0
    %v1607 = vadd.f32 %v513, %v1606
    %v1608 = vpop.f32.mrf.mxu0
    %1609 = vmatprep.mubr.bf16.mxu0 0
    %1610 = vmatmul.mubr.bf16.gmra.mxu0 %v581
    %v1611 = vpop.f32.mrf.mxu0
    %v1612 = vadd.f32 %v514, %v1611
    %v1613 = vpop.f32.mrf.mxu0
    %v1614 = vpop.f32.mrf.mxu0
    %v1615 = vadd.f32 %v515, %v1614
    %v1616 = vpop.f32.mrf.mxu0
    %1617 = vmatprep.mubr.bf16.mxu0 0
    %1618 = vmatmul.mubr.bf16.gmra.mxu0 %v582
    %v1619 = vpop.f32.mrf.mxu0
    %v1620 = vadd.f32 %v516, %v1619
    %v1621 = vpop.f32.mrf.mxu0
    %v1622 = vpop.f32.mrf.mxu0
    %v1623 = vadd.f32 %v517, %v1622
    %v1624 = vpop.f32.mrf.mxu0
    %1625 = vmatprep.mubr.bf16.mxu0 0
    %1626 = vmatmul.mubr.bf16.gmra.mxu0 %v583
    %v1627 = vpop.f32.mrf.mxu0
    %v1628 = vadd.f32 %v518, %v1627
    %v1629 = vpop.f32.mrf.mxu0
    %v1630 = vpop.f32.mrf.mxu0
    %v1631 = vadd.f32 %v519, %v1630
    %v1632 = vpop.f32.mrf.mxu0
    %1633 = vdwg.mxu0
    %1634 = vst [vmem:[#allocation10] sm:$0xff] %v1572
    %1635 = vst [vmem:[#allocation10 + $0x8] sm:$0xff] %v1575
    %1636 = vst [vmem:[#allocation10 + $0x10] sm:$0xff] %v1580
    %1637 = vst [vmem:[#allocation10 + $0x18] sm:$0xff] %v1583
    %1638 = vst [vmem:[#allocation10 + $0x20] sm:$0xff] %v1588
    %1639 = vst [vmem:[#allocation10 + $0x28] sm:$0xff] %v1591
    %1640 = vst [vmem:[#allocation10 + $0x30] sm:$0xff] %v1596
    %1641 = vst [vmem:[#allocation10 + $0x38] sm:$0xff] %v1599
    %1642 = vst [vmem:[#allocation10 + $0x40] sm:$0xff] %v1604
    %1643 = vst [vmem:[#allocation10 + $0x48] sm:$0xff] %v1607
    %1644 = vst [vmem:[#allocation10 + $0x50] sm:$0xff] %v1612
    %1645 = vst [vmem:[#allocation10 + $0x58] sm:$0xff] %v1615
    %1646 = vst [vmem:[#allocation10 + $0x60] sm:$0xff] %v1620
    %1647 = vst [vmem:[#allocation10 + $0x68] sm:$0xff] %v1623
    %1648 = vst [vmem:[#allocation10 + $0x70] sm:$0xff] %v1628
    %1649 = vst [vmem:[#allocation10 + $0x78] sm:$0xff] %v1631
    // Predicated region
    $region42: #{tpu_custom_call.1} parent=1 // pred_check
      _
    $region43: #{tpu_custom_call.1} parent=1 // pred_check_branch
      %1651 = sbr.rel (0) target = $region45
    $region44: #{tpu_custom_call.1} parent=1 // pred_region
      %s1653 = ssub.s32 2048, 2048
      %1654 = vsyncadd [#allocation4], %s1653
      %s1655 = sshll.u32 [#allocation10], 4
      %s1656 = int_to_ptr.vmem [resolvable:$true] %s1655
      %1661 = dma.vmem_to_hbm [thread:$0]  %s1656, 2048, %s6, [#allocation4], 128, 128, 8
    $region45: #{tpu_custom_call.1} parent=1 // pred_fallthru
      _
    // Predicated region
    $region46: #{tpu_custom_call.1} parent=1 // pred_check
      _
    $region47: #{tpu_custom_call.1} parent=1 // pred_check_branch
      %1663 = sbr.rel (0) target = $region49
    $region48: #{tpu_custom_call.1} parent=1 // pred_region
      %1664 = dma.done [#allocation4], 2048
    $region49: #{tpu_custom_call.1} parent=1 // pred_fallthru
      _
    %1665 = vsyncpa [#allocation3], 1
    %1666 = vsyncpa [#allocation6], 1
    %1667 = vsyncpa [#allocation9], 1
    %1668 = vsyncpa [#allocation4], 1

</llo_original>
